<compile_context>
chip_gen: v7x
topology: tpu7x:2x2x1
jax: 0.10.0
libtpu: 0.0.40
codegen_flags: <defaults>
</compile_context>

<pallas_src>
import numpy as np
import jax
import jax.numpy as jnp
from jax.experimental import pallas as pl
from jax.experimental.pallas import tpu as pltpu


def _fused_cross_kernel(keep_ref,                              # scalar prefetch (SMEM)
                        lang_hbm, lmask_ref, visn_hbm, vmask_ref,
                        wfl_ref, wfv_ref, wo_l_ref, wo_v_ref,
                        w1_l_ref, w2_l_ref, w1_v_ref, w2_v_ref,
                        lang_out_ref, visn_out_ref,
                        lang_sc, visn_sc):
    del keep_ref  # only used by the weight index_maps
    l = pl.program_id(0)
    nl = pl.num_programs(0)

    # Copy the layer-stack inputs from HBM into resident VMEM scratch exactly
    # once (they are memory_space=pl.ANY, so they are never pipelined).
    @pl.when(l == 0)
    def _():
        pltpu.sync_copy(lang_hbm, lang_sc)
        pltpu.sync_copy(visn_hbm, visn_sc)

    lang = lang_sc[...]                          # [B, Ll, H] f32 residual stream
    visn = visn_sc[...]                          # [B, Lv, H] f32 residual stream
    lmask = lmask_ref[...].astype(jnp.float32)   # [B, Ll] additive (0 / -1e4)
    vmask = vmask_ref[...].astype(jnp.float32)   # [B, Lv] additive

    B, Ll, H = lang.shape
    _, Lv, _ = visn.shape

    # One bf16 cast per stream per layer, reused as both Q-LHS and KV-LHS.
    lang_bf = lang.astype(jnp.bfloat16).reshape(B * Ll, H)
    visn_bf = visn.astype(jnp.bfloat16).reshape(B * Lv, H)

    # Fused projections: one fat [B*L, H] x [H, 3H] matmul per stream.
    #   w_from_lang = [Wq_lang*scale | Wk_for_visnQ | Wv_for_visnQ]
    #   w_from_visn = [Wk_for_langQ  | Wv_for_langQ | Wq_visn*scale]
    from_lang = jnp.dot(lang_bf, wfl_ref[...], preferred_element_type=jnp.float32)
    from_visn = jnp.dot(visn_bf, wfv_ref[...], preferred_element_type=jnp.float32)

    q_l = from_lang[:, 0 * H:1 * H].reshape(B, Ll, H)   # lang-attend queries (pre-scaled)
    k_v = from_lang[:, 1 * H:2 * H].reshape(B, Ll, H)   # visn-attend keys (from lang)
    v_v = from_lang[:, 2 * H:3 * H].reshape(B, Ll, H)   # visn-attend values (from lang)
    k_l = from_visn[:, 0 * H:1 * H].reshape(B, Lv, H)   # lang-attend keys (from visn)
    v_l = from_visn[:, 1 * H:2 * H].reshape(B, Lv, H)   # lang-attend values (from visn)
    q_v = from_visn[:, 2 * H:3 * H].reshape(B, Lv, H)   # visn-attend queries (pre-scaled)

    def attn_core(q, k, v, kv_mask, wo, x_res):
        # q: [B, Lq, H] f32 (already scaled), k/v: [B, Lk, H] f32,
        # kv_mask: [B, Lk] additive, wo: [H, H] bf16, x_res: [B, Lq, H] f32.
        Bq, Lq, Hh = q.shape
        s = jnp.einsum('bqh,bkh->bqk',
                       q.astype(jnp.bfloat16), k.astype(jnp.bfloat16),
                       preferred_element_type=jnp.float32)
        s = s + kv_mask[:, None, :]
        m = jnp.max(s, axis=-1, keepdims=True)
        p = jnp.exp(s - m)
        inv = pl.reciprocal(jnp.sum(p, axis=-1, keepdims=True), approx=True)
        p = p * inv
        ctx = jnp.einsum('bqk,bkh->bqh',
                         p.astype(jnp.bfloat16), v.astype(jnp.bfloat16),
                         preferred_element_type=jnp.float32)
        out = jnp.dot(ctx.reshape(Bq * Lq, Hh).astype(jnp.bfloat16), wo,
                      preferred_element_type=jnp.float32).reshape(Bq, Lq, Hh)
        return x_res + out

    def ffn(x, w1, w2):
        Bx, Lx, Hx = x.shape
        x2 = x.reshape(Bx * Lx, Hx).astype(jnp.bfloat16)
        h = jnp.maximum(jnp.dot(x2, w1, preferred_element_type=jnp.float32), 0.0)
        o = jnp.dot(h.astype(jnp.bfloat16), w2, preferred_element_type=jnp.float32)
        return x + o.reshape(Bx, Lx, Hx)

    # Both cross-attentions consume the layer's *input* lang/visn streams.
    lang_new = ffn(attn_core(q_l, k_l, v_l, vmask, wo_l_ref[...], lang),
                   w1_l_ref[...], w2_l_ref[...])
    visn_new = ffn(attn_core(q_v, k_v, v_v, lmask, wo_v_ref[...], visn),
                   w1_v_ref[...], w2_v_ref[...])

    lang_sc[...] = lang_new
    visn_sc[...] = visn_new

    @pl.when(l == nl - 1)
    def _():
        lang_out_ref[...] = lang_new.astype(lang_out_ref.dtype)
        visn_out_ref[...] = visn_new.astype(visn_out_ref.dtype)


_WEIGHT_NAMES = ["w_from_lang", "w_from_visn",
                 "wo_l", "wo_v",
                 "w1_l", "w2_l", "w1_v", "w2_v"]


def _nbytes(shape, dtype):
    return int(np.prod(shape)) * np.dtype(dtype).itemsize


def fused_cross_layers(lang, lmask2d, visn, vmask2d, stacked_params, keep_idx):
    """Run all kept cross-modal layers in one pallas_call (layer axis = grid)."""
    B, Ll, H = lang.shape
    _, Lv, _ = visn.shape
    num_kept = int(keep_idx.shape[0])

    out_dtypes = (lang.dtype, visn.dtype)
    lang32 = lang.astype(jnp.float32)
    visn32 = visn.astype(jnp.float32)

    weights = [stacked_params[n] for n in _WEIGHT_NAMES]     # each [NL, ...] bf16

    def weight_spec(w):
        # Per-grid-step DMA of one kept layer's weight; keep_idx drives the
        # index_map so the next kept layer's weights prefetch behind compute.
        # pl.Squeezed(): the stacked layer dim never appears inside the kernel.
        return pl.BlockSpec((pl.Squeezed(),) + tuple(w.shape[1:]),
                            lambda l, keep: (keep[l], 0, 0))

    grid_spec = pltpu.PrefetchScalarGridSpec(
        num_scalar_prefetch=1,
        grid=(num_kept,),
        in_specs=[
            pl.BlockSpec(memory_space=pl.ANY),                 # lang (HBM, copied at l==0)
            pl.BlockSpec((B, Ll), lambda l, keep: (0, 0)),     # lang additive mask
            pl.BlockSpec(memory_space=pl.ANY),                 # visn (HBM, copied at l==0)
            pl.BlockSpec((B, Lv), lambda l, keep: (0, 0)),     # visn additive mask
        ] + [weight_spec(w) for w in weights],
        out_specs=[
            pl.BlockSpec((B, Ll, H), lambda l, keep: (0, 0, 0)),
            pl.BlockSpec((B, Lv, H), lambda l, keep: (0, 0, 0)),
        ],
        scratch_shapes=[
            pltpu.VMEM((B, Ll, H), jnp.float32),               # resident lang stream
            pltpu.VMEM((B, Lv, H), jnp.float32),               # resident visn stream
        ],
    )

    # Explicit VMEM budget: double-buffered per-layer weights + resident
    # activation scratch + pipelined masks/outputs + slack.
    per_layer_w = sum(_nbytes(w.shape[1:], w.dtype) for w in weights)
    act = _nbytes((B, Ll, H), jnp.float32) + _nbytes((B, Lv, H), jnp.float32)
    masks = 2 * (_nbytes((B, Ll), lmask2d.dtype) + _nbytes((B, Lv), vmask2d.dtype))
    outs = 2 * (_nbytes((B, Ll, H), out_dtypes[0]) + _nbytes((B, Lv, H), out_dtypes[1]))
    vmem_limit = int(min(2 * per_layer_w + act + masks + outs + (4 << 20), 96 << 20))
    # NOTE: at realistic LXMERT sizes (H=768, FFN=3072) the bf16 weights are
    # ~27 MiB/layer; on v7x (64 MiB VMEM) single-buffer / FFN-tile the FFN
    # weights or quantize (fp8 on v7x, int8 on v5e/v6e) to stay in budget.

    out_shape = (
        jax.ShapeDtypeStruct((B, Ll, H), out_dtypes[0]),
        jax.ShapeDtypeStruct((B, Lv, H), out_dtypes[1]),
    )

    fn = pl.pallas_call(
        _fused_cross_kernel,
        grid_spec=grid_spec,
        out_shape=out_shape,
        compiler_params=pltpu.CompilerParams(
            # The single grid axis is the (sequential) layer axis.
            dimension_semantics=("arbitrary",),
            vmem_limit_bytes=vmem_limit),
    )
    return fn(jnp.asarray(keep_idx, dtype=jnp.int32),
              lang32, lmask2d, visn32, vmask2d, *weights)


def init_stacked_params(key, num_layers, hidden, ffn_dim):
    """Deterministic synthetic bf16 weights, stacked over the layer axis, with
    shared-LHS projections packed into [H, 3H] blocks and 1/sqrt(H) folded
    into the query projections."""
    keys = jax.random.split(key, 12)
    s = 0.05
    raw_shapes = {
        "wq_l": (hidden, hidden), "wk_l": (hidden, hidden),
        "wv_l": (hidden, hidden), "wo_l": (hidden, hidden),
        "wq_v": (hidden, hidden), "wk_v": (hidden, hidden),
        "wv_v": (hidden, hidden), "wo_v": (hidden, hidden),
        "w1_l": (hidden, ffn_dim), "w2_l": (ffn_dim, hidden),
        "w1_v": (hidden, ffn_dim), "w2_v": (ffn_dim, hidden),
    }
    raw = {}
    for (name, shp), k in zip(raw_shapes.items(), keys):
        raw[name] = s * jax.random.normal(k, (num_layers,) + shp, jnp.float32)

    scale = jnp.float32(1.0 / np.sqrt(hidden))
    # LHS = lang rows: [Wq_lang*scale | Wk_visnQ | Wv_visnQ]
    w_from_lang = jnp.concatenate(
        [raw["wq_l"] * scale, raw["wk_v"], raw["wv_v"]], axis=-1)
    # LHS = visn rows: [Wk_langQ | Wv_langQ | Wq_visn*scale]
    w_from_visn = jnp.concatenate(
        [raw["wk_l"], raw["wv_l"], raw["wq_v"] * scale], axis=-1)

    params = {
        "w_from_lang": w_from_lang.astype(jnp.bfloat16),
        "w_from_visn": w_from_visn.astype(jnp.bfloat16),
        "wo_l": raw["wo_l"].astype(jnp.bfloat16),
        "wo_v": raw["wo_v"].astype(jnp.bfloat16),
        "w1_l": raw["w1_l"].astype(jnp.bfloat16),
        "w2_l": raw["w2_l"].astype(jnp.bfloat16),
        "w1_v": raw["w1_v"].astype(jnp.bfloat16),
        "w2_v": raw["w2_v"].astype(jnp.bfloat16),
    }
    return params


def layerdrop_cross_forward(lang_feats, lang_attention_mask,
                            visn_feats, visn_attention_mask,
                            stacked_params, layers_to_drop, drop_rng):
    """LayerDrop_Cross.forward: draw `layers_to_drop` indices with replacement
    (host-side numpy RNG, matching torch.randint semantics without a device
    sync) and run the kept layers through one fused Pallas kernel.
    NOTE: each distinct keep-set length recompiles the pallas_call (grid size
    is static); functionally fine, caching hazard only."""
    num_layers = stacked_params["w_from_lang"].shape[0]
    drop_idx = drop_rng.integers(0, num_layers, size=(layers_to_drop,))
    dropped = set(int(i) for i in drop_idx)
    keep_idx = np.array([i for i in range(num_layers) if i not in dropped],
                        dtype=np.int32)
    if keep_idx.size == 0:
        return lang_feats, visn_feats

    # BERT-style extended masks [B,1,1,L] -> lane-aligned 2D [B,L].
    lmask2d = lang_attention_mask.reshape(lang_attention_mask.shape[0], -1)
    vmask2d = visn_attention_mask.reshape(visn_attention_mask.shape[0], -1)
    return fused_cross_layers(lang_feats, lmask2d, visn_feats, vmask2d,
                              stacked_params, keep_idx)


if __name__ == "__main__":
    # Small but MXU/lane-friendly shapes: hidden / FFN are multiples of 128.
    B, L_LANG, L_VISN, HIDDEN, FFN = 2, 8, 8, 128, 256
    NUM_LAYERS, LAYERS_TO_DROP = 4, 2

    root = jax.random.PRNGKey(0)
    k_lang, k_visn, k_lm, k_vm, k_params = jax.random.split(root, 5)

    lang_feats = jax.random.normal(k_lang, (B, L_LANG, HIDDEN), jnp.float32)
    visn_feats = jax.random.normal(k_visn, (B, L_VISN, HIDDEN), jnp.float32)

    # BERT-style additive extended masks: 0.0 keep, -1e4 masked.
    lang_keep = (jax.random.uniform(k_lm, (B, 1, 1, L_LANG)) > 0.2).astype(jnp.float32)
    visn_keep = (jax.random.uniform(k_vm, (B, 1, 1, L_VISN)) > 0.2).astype(jnp.float32)
    lang_attention_mask = (1.0 - lang_keep) * -10000.0
    visn_attention_mask = (1.0 - visn_keep) * -10000.0

    stacked_params = init_stacked_params(k_params, NUM_LAYERS, HIDDEN, FFN)

    drop_rng = np.random.default_rng(0)   # host-side layer-drop RNG (torch.randint analog)
    lang_out, visn_out = layerdrop_cross_forward(
        lang_feats, lang_attention_mask, visn_feats, visn_attention_mask,
        stacked_params, LAYERS_TO_DROP, drop_rng)

    jax.block_until_ready((lang_out, visn_out))
    assert lang_out.shape == (B, L_LANG, HIDDEN)
    assert visn_out.shape == (B, L_VISN, HIDDEN)
    assert jnp.all(jnp.isfinite(lang_out)) and jnp.all(jnp.isfinite(visn_out))
    print("KERNEL_OK")
</pallas_src>

<mosaic_0001>
module attributes {stable_mosaic.version = 11 : i64} {
  func.func @_fused_cross_kernel(%arg0: i32, %arg1: memref<2xi32, #tpu.memory_space<smem>>, %arg2: memref<2x8x128xf32, #tpu.memory_space<any>>, %arg3: memref<2x8xf32, #tpu.memory_space<vmem>>, %arg4: memref<2x8x128xf32, #tpu.memory_space<any>>, %arg5: memref<2x8xf32, #tpu.memory_space<vmem>>, %arg6: memref<1x128x384xbf16, #tpu.memory_space<vmem>>, %arg7: memref<1x128x384xbf16, #tpu.memory_space<vmem>>, %arg8: memref<1x128x128xbf16, #tpu.memory_space<vmem>>, %arg9: memref<1x128x128xbf16, #tpu.memory_space<vmem>>, %arg10: memref<1x128x256xbf16, #tpu.memory_space<vmem>>, %arg11: memref<1x256x128xbf16, #tpu.memory_space<vmem>>, %arg12: memref<1x128x256xbf16, #tpu.memory_space<vmem>>, %arg13: memref<1x256x128xbf16, #tpu.memory_space<vmem>>, %arg14: memref<2x8x128xf32, #tpu.memory_space<vmem>>, %arg15: memref<2x8x128xf32, #tpu.memory_space<vmem>>, %arg16: memref<2x8x128xf32, #tpu.memory_space<vmem>>, %arg17: memref<2x8x128xf32, #tpu.memory_space<vmem>>) attributes {dimension_semantics = [#tpu.dimension_semantics<arbitrary>], iteration_bounds = array<i64: 2>, scalar_prefetch = 1 : i64, scratch_operands = 2 : i64, tpu.core_type = #tpu.core_type<tc>, window_params = [{}, {pipeline_mode = #tpu.pipeline_mode<synchronous>, transform_indices = @transform_1, window_bounds = array<i64: 2, 8>}, {}, {pipeline_mode = #tpu.pipeline_mode<synchronous>, transform_indices = @transform_3, window_bounds = array<i64: 2, 8>}, {transform_indices = @transform_4, window_bounds = array<i64: 1, 128, 384>}, {transform_indices = @transform_5, window_bounds = array<i64: 1, 128, 384>}, {transform_indices = @transform_6, window_bounds = array<i64: 1, 128, 128>}, {transform_indices = @transform_7, window_bounds = array<i64: 1, 128, 128>}, {transform_indices = @transform_8, window_bounds = array<i64: 1, 128, 256>}, {transform_indices = @transform_9, window_bounds = array<i64: 1, 256, 128>}, {transform_indices = @transform_10, window_bounds = array<i64: 1, 128, 256>}, {transform_indices = @transform_11, window_bounds = array<i64: 1, 256, 128>}, {pipeline_mode = #tpu.pipeline_mode<synchronous>, transform_indices = @transform_12, window_bounds = array<i64: 2, 8, 128>}, {pipeline_mode = #tpu.pipeline_mode<synchronous>, transform_indices = @transform_13, window_bounds = array<i64: 2, 8, 128>}]} {
    %c0_i32 = arith.constant 0 : i32
    %0 = arith.cmpi eq, %arg0, %c0_i32 : i32
    %1 = arith.extui %0 : i1 to i32
    %c0_i32_0 = arith.constant 0 : i32
    %2 = arith.cmpi ne, %1, %c0_i32_0 : i32
    scf.if %2 {
      "tpu.region"() ({
        %112 = tpu.sem_alloc : memref<!tpu.dma_semaphore, #tpu.memory_space<semaphore_mem>>
        tpu.enqueue_dma source(%arg2 : memref<2x8x128xf32, #tpu.memory_space<any>>) target(%arg16 : memref<2x8x128xf32, #tpu.memory_space<vmem>>) target_semaphore(%112 : memref<!tpu.dma_semaphore, #tpu.memory_space<semaphore_mem>>)
        tpu.wait_dma2 semaphore(%112 : memref<!tpu.dma_semaphore, #tpu.memory_space<semaphore_mem>>) src(%arg2 : memref<2x8x128xf32, #tpu.memory_space<any>>) dst(%arg16 : memref<2x8x128xf32, #tpu.memory_space<vmem>>)
        tpu.yield
      }) : () -> ()
      "tpu.region"() ({
        %112 = tpu.sem_alloc : memref<!tpu.dma_semaphore, #tpu.memory_space<semaphore_mem>>
        tpu.enqueue_dma source(%arg4 : memref<2x8x128xf32, #tpu.memory_space<any>>) target(%arg17 : memref<2x8x128xf32, #tpu.memory_space<vmem>>) target_semaphore(%112 : memref<!tpu.dma_semaphore, #tpu.memory_space<semaphore_mem>>)
        tpu.wait_dma2 semaphore(%112 : memref<!tpu.dma_semaphore, #tpu.memory_space<semaphore_mem>>) src(%arg4 : memref<2x8x128xf32, #tpu.memory_space<any>>) dst(%arg17 : memref<2x8x128xf32, #tpu.memory_space<vmem>>)
        tpu.yield
      }) : () -> ()
    } else {
    }
    %c0 = arith.constant 0 : index
    %c0_1 = arith.constant 0 : index
    %c0_2 = arith.constant 0 : index
    %3 = vector.load %arg16[%c0, %c0_1, %c0_2] : memref<2x8x128xf32, #tpu.memory_space<vmem>>, vector<2x8x128xf32>
    %c0_3 = arith.constant 0 : index
    %c0_4 = arith.constant 0 : index
    %c0_5 = arith.constant 0 : index
    %4 = vector.load %arg17[%c0_3, %c0_4, %c0_5] : memref<2x8x128xf32, #tpu.memory_space<vmem>>, vector<2x8x128xf32>
    %c0_6 = arith.constant 0 : index
    %c0_7 = arith.constant 0 : index
    %5 = vector.load %arg3[%c0_6, %c0_7] : memref<2x8xf32, #tpu.memory_space<vmem>>, vector<2x8xf32>
    %c0_8 = arith.constant 0 : index
    %c0_9 = arith.constant 0 : index
    %6 = vector.load %arg5[%c0_8, %c0_9] : memref<2x8xf32, #tpu.memory_space<vmem>>, vector<2x8xf32>
    %7 = arith.truncf %3 : vector<2x8x128xf32> to vector<2x8x128xbf16>
    %8 = vector.shape_cast %7 : vector<2x8x128xbf16> to vector<16x128xbf16>
    %9 = arith.truncf %4 : vector<2x8x128xf32> to vector<2x8x128xbf16>
    %10 = vector.shape_cast %9 : vector<2x8x128xbf16> to vector<16x128xbf16>
    %c0_10 = arith.constant 0 : index
    %c0_11 = arith.constant 0 : index
    %c0_12 = arith.constant 0 : index
    %11 = vector.load %arg6[%c0_10, %c0_11, %c0_12] : memref<1x128x384xbf16, #tpu.memory_space<vmem>>, vector<1x128x384xbf16>
    %12 = vector.shape_cast %11 : vector<1x128x384xbf16> to vector<128x384xbf16>
    %cst = arith.constant dense<0.000000e+00> : vector<16x384xf32>
    %13 = tpu.matmul %8, %12, %cst {dimension_numbers = #tpu.dot_dimension_numbers<[1], [0], [0], [1], [0, 0, 1, 1], [], []>} : vector<16x128xbf16>, vector<128x384xbf16>, vector<16x384xf32> -> vector<16x384xf32>
    %c0_13 = arith.constant 0 : index
    %c0_14 = arith.constant 0 : index
    %c0_15 = arith.constant 0 : index
    %14 = vector.load %arg7[%c0_13, %c0_14, %c0_15] : memref<1x128x384xbf16, #tpu.memory_space<vmem>>, vector<1x128x384xbf16>
    %15 = vector.shape_cast %14 : vector<1x128x384xbf16> to vector<128x384xbf16>
    %cst_16 = arith.constant dense<0.000000e+00> : vector<16x384xf32>
    %16 = tpu.matmul %10, %15, %cst_16 {dimension_numbers = #tpu.dot_dimension_numbers<[1], [0], [0], [1], [0, 0, 1, 1], [], []>} : vector<16x128xbf16>, vector<128x384xbf16>, vector<16x384xf32> -> vector<16x384xf32>
    %17 = vector.extract_strided_slice %13 {offsets = [0, 0], sizes = [16, 128], strides = [1, 1]} : vector<16x384xf32> to vector<16x128xf32>
    %18 = vector.shape_cast %17 : vector<16x128xf32> to vector<2x8x128xf32>
    %19 = vector.extract_strided_slice %13 {offsets = [0, 128], sizes = [16, 128], strides = [1, 1]} : vector<16x384xf32> to vector<16x128xf32>
    %20 = vector.shape_cast %19 : vector<16x128xf32> to vector<2x8x128xf32>
    %21 = vector.extract_strided_slice %13 {offsets = [0, 256], sizes = [16, 128], strides = [1, 1]} : vector<16x384xf32> to vector<16x128xf32>
    %22 = vector.shape_cast %21 : vector<16x128xf32> to vector<2x8x128xf32>
    %23 = vector.extract_strided_slice %16 {offsets = [0, 0], sizes = [16, 128], strides = [1, 1]} : vector<16x384xf32> to vector<16x128xf32>
    %24 = vector.shape_cast %23 : vector<16x128xf32> to vector<2x8x128xf32>
    %25 = vector.extract_strided_slice %16 {offsets = [0, 128], sizes = [16, 128], strides = [1, 1]} : vector<16x384xf32> to vector<16x128xf32>
    %26 = vector.shape_cast %25 : vector<16x128xf32> to vector<2x8x128xf32>
    %27 = vector.extract_strided_slice %16 {offsets = [0, 256], sizes = [16, 128], strides = [1, 1]} : vector<16x384xf32> to vector<16x128xf32>
    %28 = vector.shape_cast %27 : vector<16x128xf32> to vector<2x8x128xf32>
    %c0_17 = arith.constant 0 : index
    %c0_18 = arith.constant 0 : index
    %c0_19 = arith.constant 0 : index
    %29 = vector.load %arg8[%c0_17, %c0_18, %c0_19] : memref<1x128x128xbf16, #tpu.memory_space<vmem>>, vector<1x128x128xbf16>
    %30 = vector.shape_cast %29 : vector<1x128x128xbf16> to vector<128x128xbf16>
    %31 = arith.truncf %18 : vector<2x8x128xf32> to vector<2x8x128xbf16>
    %32 = arith.truncf %24 : vector<2x8x128xf32> to vector<2x8x128xbf16>
    "tpu.trace_start"() <{level = 10 : i32, message = "bqh,bkh->bqk"}> : () -> ()
    %cst_20 = arith.constant dense<0.000000e+00> : vector<2x8x8xf32>
    %33 = tpu.matmul %31, %32, %cst_20 {dimension_numbers = #tpu.dot_dimension_numbers<[2], [2], [1], [1], [0, 0, 0, 1, 1, 1], [0], [0]>} : vector<2x8x128xbf16>, vector<2x8x128xbf16>, vector<2x8x8xf32> -> vector<2x8x8xf32>
    "tpu.trace_stop"() : () -> ()
    %34 = vector.shape_cast %6 : vector<2x8xf32> to vector<2x1x8xf32>
    %35 = vector.broadcast %34 : vector<2x1x8xf32> to vector<2x8x8xf32>
    %36 = arith.addf %33, %35 : vector<2x8x8xf32>
    %cst_21 = arith.constant dense<0xFF800000> : vector<2x8xf32>
    %37 = vector.multi_reduction <maximumf>, %36, %cst_21 [2] : vector<2x8x8xf32> to vector<2x8xf32>
    %38 = vector.shape_cast %37 : vector<2x8xf32> to vector<2x8x1xf32>
    %39 = vector.broadcast %38 : vector<2x8x1xf32> to vector<2x8x8xf32>
    %40 = arith.subf %36, %39 : vector<2x8x8xf32>
    %41 = math.exp %40 : vector<2x8x8xf32>
    %cst_22 = arith.constant dense<0.000000e+00> : vector<2x8xf32>
    %42 = vector.multi_reduction <add>, %41, %cst_22 [2] : vector<2x8x8xf32> to vector<2x8xf32>
    %43 = vector.shape_cast %42 : vector<2x8xf32> to vector<2x8x1xf32>
    %44 = tpu.reciprocal %43 {approx = true} : vector<2x8x1xf32> -> vector<2x8x1xf32>
    %45 = vector.broadcast %44 : vector<2x8x1xf32> to vector<2x8x8xf32>
    %46 = arith.mulf %41, %45 : vector<2x8x8xf32>
    %47 = arith.truncf %46 : vector<2x8x8xf32> to vector<2x8x8xbf16>
    %48 = arith.truncf %26 : vector<2x8x128xf32> to vector<2x8x128xbf16>
    "tpu.trace_start"() <{level = 10 : i32, message = "bqk,bkh->bqh"}> : () -> ()
    %cst_23 = arith.constant dense<0.000000e+00> : vector<2x8x128xf32>
    %49 = tpu.matmul %47, %48, %cst_23 {dimension_numbers = #tpu.dot_dimension_numbers<[2], [1], [1], [2], [0, 0, 0, 1, 1, 2], [0], [0]>} : vector<2x8x8xbf16>, vector<2x8x128xbf16>, vector<2x8x128xf32> -> vector<2x8x128xf32>
    "tpu.trace_stop"() : () -> ()
    %50 = vector.shape_cast %49 : vector<2x8x128xf32> to vector<16x128xf32>
    %51 = arith.truncf %50 : vector<16x128xf32> to vector<16x128xbf16>
    %cst_24 = arith.constant dense<0.000000e+00> : vector<16x128xf32>
    %52 = tpu.matmul %51, %30, %cst_24 {dimension_numbers = #tpu.dot_dimension_numbers<[1], [0], [0], [1], [0, 0, 1, 1], [], []>} : vector<16x128xbf16>, vector<128x128xbf16>, vector<16x128xf32> -> vector<16x128xf32>
    %53 = vector.shape_cast %52 : vector<16x128xf32> to vector<2x8x128xf32>
    %54 = arith.addf %3, %53 : vector<2x8x128xf32>
    %c0_25 = arith.constant 0 : index
    %c0_26 = arith.constant 0 : index
    %c0_27 = arith.constant 0 : index
    %55 = vector.load %arg10[%c0_25, %c0_26, %c0_27] : memref<1x128x256xbf16, #tpu.memory_space<vmem>>, vector<1x128x256xbf16>
    %56 = vector.shape_cast %55 : vector<1x128x256xbf16> to vector<128x256xbf16>
    %c0_28 = arith.constant 0 : index
    %c0_29 = arith.constant 0 : index
    %c0_30 = arith.constant 0 : index
    %57 = vector.load %arg11[%c0_28, %c0_29, %c0_30] : memref<1x256x128xbf16, #tpu.memory_space<vmem>>, vector<1x256x128xbf16>
    %58 = vector.shape_cast %57 : vector<1x256x128xbf16> to vector<256x128xbf16>
    %59 = vector.shape_cast %54 : vector<2x8x128xf32> to vector<16x128xf32>
    %60 = arith.truncf %59 : vector<16x128xf32> to vector<16x128xbf16>
    %cst_31 = arith.constant dense<0.000000e+00> : vector<16x256xf32>
    %61 = tpu.matmul %60, %56, %cst_31 {dimension_numbers = #tpu.dot_dimension_numbers<[1], [0], [0], [1], [0, 0, 1, 1], [], []>} : vector<16x128xbf16>, vector<128x256xbf16>, vector<16x256xf32> -> vector<16x256xf32>
    %cst_32 = arith.constant 0.000000e+00 : f32
    %62 = vector.broadcast %cst_32 : f32 to vector<16x256xf32>
    %63 = arith.maximumf %61, %62 : vector<16x256xf32>
    %64 = arith.truncf %63 : vector<16x256xf32> to vector<16x256xbf16>
    %cst_33 = arith.constant dense<0.000000e+00> : vector<16x128xf32>
    %65 = tpu.matmul %64, %58, %cst_33 {dimension_numbers = #tpu.dot_dimension_numbers<[1], [0], [0], [1], [0, 0, 1, 1], [], []>} : vector<16x256xbf16>, vector<256x128xbf16>, vector<16x128xf32> -> vector<16x128xf32>
    %66 = vector.shape_cast %65 : vector<16x128xf32> to vector<2x8x128xf32>
    %67 = arith.addf %54, %66 : vector<2x8x128xf32>
    %c0_34 = arith.constant 0 : index
    %c0_35 = arith.constant 0 : index
    %c0_36 = arith.constant 0 : index
    %68 = vector.load %arg9[%c0_34, %c0_35, %c0_36] : memref<1x128x128xbf16, #tpu.memory_space<vmem>>, vector<1x128x128xbf16>
    %69 = vector.shape_cast %68 : vector<1x128x128xbf16> to vector<128x128xbf16>
    %70 = arith.truncf %28 : vector<2x8x128xf32> to vector<2x8x128xbf16>
    %71 = arith.truncf %20 : vector<2x8x128xf32> to vector<2x8x128xbf16>
    "tpu.trace_start"() <{level = 10 : i32, message = "bqh,bkh->bqk"}> : () -> ()
    %cst_37 = arith.constant dense<0.000000e+00> : vector<2x8x8xf32>
    %72 = tpu.matmul %70, %71, %cst_37 {dimension_numbers = #tpu.dot_dimension_numbers<[2], [2], [1], [1], [0, 0, 0, 1, 1, 1], [0], [0]>} : vector<2x8x128xbf16>, vector<2x8x128xbf16>, vector<2x8x8xf32> -> vector<2x8x8xf32>
    "tpu.trace_stop"() : () -> ()
    %73 = vector.shape_cast %5 : vector<2x8xf32> to vector<2x1x8xf32>
    %74 = vector.broadcast %73 : vector<2x1x8xf32> to vector<2x8x8xf32>
    %75 = arith.addf %72, %74 : vector<2x8x8xf32>
    %cst_38 = arith.constant dense<0xFF800000> : vector<2x8xf32>
    %76 = vector.multi_reduction <maximumf>, %75, %cst_38 [2] : vector<2x8x8xf32> to vector<2x8xf32>
    %77 = vector.shape_cast %76 : vector<2x8xf32> to vector<2x8x1xf32>
    %78 = vector.broadcast %77 : vector<2x8x1xf32> to vector<2x8x8xf32>
    %79 = arith.subf %75, %78 : vector<2x8x8xf32>
    %80 = math.exp %79 : vector<2x8x8xf32>
    %cst_39 = arith.constant dense<0.000000e+00> : vector<2x8xf32>
    %81 = vector.multi_reduction <add>, %80, %cst_39 [2] : vector<2x8x8xf32> to vector<2x8xf32>
    %82 = vector.shape_cast %81 : vector<2x8xf32> to vector<2x8x1xf32>
    %83 = tpu.reciprocal %82 {approx = true} : vector<2x8x1xf32> -> vector<2x8x1xf32>
    %84 = vector.broadcast %83 : vector<2x8x1xf32> to vector<2x8x8xf32>
    %85 = arith.mulf %80, %84 : vector<2x8x8xf32>
    %86 = arith.truncf %85 : vector<2x8x8xf32> to vector<2x8x8xbf16>
    %87 = arith.truncf %22 : vector<2x8x128xf32> to vector<2x8x128xbf16>
    "tpu.trace_start"() <{level = 10 : i32, message = "bqk,bkh->bqh"}> : () -> ()
    %cst_40 = arith.constant dense<0.000000e+00> : vector<2x8x128xf32>
    %88 = tpu.matmul %86, %87, %cst_40 {dimension_numbers = #tpu.dot_dimension_numbers<[2], [1], [1], [2], [0, 0, 0, 1, 1, 2], [0], [0]>} : vector<2x8x8xbf16>, vector<2x8x128xbf16>, vector<2x8x128xf32> -> vector<2x8x128xf32>
    "tpu.trace_stop"() : () -> ()
    %89 = vector.shape_cast %88 : vector<2x8x128xf32> to vector<16x128xf32>
    %90 = arith.truncf %89 : vector<16x128xf32> to vector<16x128xbf16>
    %cst_41 = arith.constant dense<0.000000e+00> : vector<16x128xf32>
    %91 = tpu.matmul %90, %69, %cst_41 {dimension_numbers = #tpu.dot_dimension_numbers<[1], [0], [0], [1], [0, 0, 1, 1], [], []>} : vector<16x128xbf16>, vector<128x128xbf16>, vector<16x128xf32> -> vector<16x128xf32>
    %92 = vector.shape_cast %91 : vector<16x128xf32> to vector<2x8x128xf32>
    %93 = arith.addf %4, %92 : vector<2x8x128xf32>
    %c0_42 = arith.constant 0 : index
    %c0_43 = arith.constant 0 : index
    %c0_44 = arith.constant 0 : index
    %94 = vector.load %arg12[%c0_42, %c0_43, %c0_44] : memref<1x128x256xbf16, #tpu.memory_space<vmem>>, vector<1x128x256xbf16>
    %95 = vector.shape_cast %94 : vector<1x128x256xbf16> to vector<128x256xbf16>
    %c0_45 = arith.constant 0 : index
    %c0_46 = arith.constant 0 : index
    %c0_47 = arith.constant 0 : index
    %96 = vector.load %arg13[%c0_45, %c0_46, %c0_47] : memref<1x256x128xbf16, #tpu.memory_space<vmem>>, vector<1x256x128xbf16>
    %97 = vector.shape_cast %96 : vector<1x256x128xbf16> to vector<256x128xbf16>
    %98 = vector.shape_cast %93 : vector<2x8x128xf32> to vector<16x128xf32>
    %99 = arith.truncf %98 : vector<16x128xf32> to vector<16x128xbf16>
    %cst_48 = arith.constant dense<0.000000e+00> : vector<16x256xf32>
    %100 = tpu.matmul %99, %95, %cst_48 {dimension_numbers = #tpu.dot_dimension_numbers<[1], [0], [0], [1], [0, 0, 1, 1], [], []>} : vector<16x128xbf16>, vector<128x256xbf16>, vector<16x256xf32> -> vector<16x256xf32>
    %cst_49 = arith.constant 0.000000e+00 : f32
    %101 = vector.broadcast %cst_49 : f32 to vector<16x256xf32>
    %102 = arith.maximumf %100, %101 : vector<16x256xf32>
    %103 = arith.truncf %102 : vector<16x256xf32> to vector<16x256xbf16>
    %cst_50 = arith.constant dense<0.000000e+00> : vector<16x128xf32>
    %104 = tpu.matmul %103, %97, %cst_50 {dimension_numbers = #tpu.dot_dimension_numbers<[1], [0], [0], [1], [0, 0, 1, 1], [], []>} : vector<16x256xbf16>, vector<256x128xbf16>, vector<16x128xf32> -> vector<16x128xf32>
    %105 = vector.shape_cast %104 : vector<16x128xf32> to vector<2x8x128xf32>
    %106 = arith.addf %93, %105 : vector<2x8x128xf32>
    %c0_51 = arith.constant 0 : index
    %c0_52 = arith.constant 0 : index
    %c0_53 = arith.constant 0 : index
    %107 = vector.load %arg16[%c0_51, %c0_52, %c0_53] : memref<2x8x128xf32, #tpu.memory_space<vmem>>, vector<2x8x128xf32>
    tpu.vector_store %arg16[%c0_51, %c0_52, %c0_53], %67 {strides = array<i32>} : memref<2x8x128xf32, #tpu.memory_space<vmem>>, vector<2x8x128xf32>,
    %c0_54 = arith.constant 0 : index
    %c0_55 = arith.constant 0 : index
    %c0_56 = arith.constant 0 : index
    %108 = vector.load %arg17[%c0_54, %c0_55, %c0_56] : memref<2x8x128xf32, #tpu.memory_space<vmem>>, vector<2x8x128xf32>
    tpu.vector_store %arg17[%c0_54, %c0_55, %c0_56], %106 {strides = array<i32>} : memref<2x8x128xf32, #tpu.memory_space<vmem>>, vector<2x8x128xf32>,
    %c1_i32 = arith.constant 1 : i32
    %109 = arith.cmpi eq, %arg0, %c1_i32 : i32
    %110 = arith.extui %109 : i1 to i32
    %c0_i32_57 = arith.constant 0 : i32
    %111 = arith.cmpi ne, %110, %c0_i32_57 : i32
    scf.if %111 {
      %c0_58 = arith.constant 0 : index
      %c0_59 = arith.constant 0 : index
      %c0_60 = arith.constant 0 : index
      %112 = vector.load %arg14[%c0_58, %c0_59, %c0_60] : memref<2x8x128xf32, #tpu.memory_space<vmem>>, vector<2x8x128xf32>
      tpu.vector_store %arg14[%c0_58, %c0_59, %c0_60], %67 {strides = array<i32>} : memref<2x8x128xf32, #tpu.memory_space<vmem>>, vector<2x8x128xf32>,
      %c0_61 = arith.constant 0 : index
      %c0_62 = arith.constant 0 : index
      %c0_63 = arith.constant 0 : index
      %113 = vector.load %arg15[%c0_61, %c0_62, %c0_63] : memref<2x8x128xf32, #tpu.memory_space<vmem>>, vector<2x8x128xf32>
      tpu.vector_store %arg15[%c0_61, %c0_62, %c0_63], %106 {strides = array<i32>} : memref<2x8x128xf32, #tpu.memory_space<vmem>>, vector<2x8x128xf32>,
    } else {
    }
    return
  }
  func.func @transform_1(%arg0: i32, %arg1: memref<2xi32, #tpu.memory_space<smem>>) -> (i32, i32) {
    %c0_i32 = arith.constant 0 : i32
    %c0_i32_0 = arith.constant 0 : i32
    %c0_i32_1 = arith.constant 0 : i32
    return %c0_i32, %c0_i32_0 : i32, i32
  }
  func.func @transform_3(%arg0: i32, %arg1: memref<2xi32, #tpu.memory_space<smem>>) -> (i32, i32) {
    %c0_i32 = arith.constant 0 : i32
    %c0_i32_0 = arith.constant 0 : i32
    %c0_i32_1 = arith.constant 0 : i32
    return %c0_i32, %c0_i32_0 : i32, i32
  }
  func.func @transform_4(%arg0: i32, %arg1: memref<2xi32, #tpu.memory_space<smem>>) -> (i32, i32, i32) {
    %0 = arith.index_cast %arg0 : i32 to index
    %1 = memref.load %arg1[%0] : memref<2xi32, #tpu.memory_space<smem>>
    %c0_i32 = arith.constant 0 : i32
    %c0_i32_0 = arith.constant 0 : i32
    %c0_i32_1 = arith.constant 0 : i32
    return %1, %c0_i32, %c0_i32_0 : i32, i32, i32
  }
  func.func @transform_5(%arg0: i32, %arg1: memref<2xi32, #tpu.memory_space<smem>>) -> (i32, i32, i32) {
    %0 = arith.index_cast %arg0 : i32 to index
    %1 = memref.load %arg1[%0] : memref<2xi32, #tpu.memory_space<smem>>
    %c0_i32 = arith.constant 0 : i32
    %c0_i32_0 = arith.constant 0 : i32
    %c0_i32_1 = arith.constant 0 : i32
    return %1, %c0_i32, %c0_i32_0 : i32, i32, i32
  }
  func.func @transform_6(%arg0: i32, %arg1: memref<2xi32, #tpu.memory_space<smem>>) -> (i32, i32, i32) {
    %0 = arith.index_cast %arg0 : i32 to index
    %1 = memref.load %arg1[%0] : memref<2xi32, #tpu.memory_space<smem>>
    %c0_i32 = arith.constant 0 : i32
    %c0_i32_0 = arith.constant 0 : i32
    %c0_i32_1 = arith.constant 0 : i32
    return %1, %c0_i32, %c0_i32_0 : i32, i32, i32
  }
  func.func @transform_7(%arg0: i32, %arg1: memref<2xi32, #tpu.memory_space<smem>>) -> (i32, i32, i32) {
    %0 = arith.index_cast %arg0 : i32 to index
    %1 = memref.load %arg1[%0] : memref<2xi32, #tpu.memory_space<smem>>
    %c0_i32 = arith.constant 0 : i32
    %c0_i32_0 = arith.constant 0 : i32
    %c0_i32_1 = arith.constant 0 : i32
    return %1, %c0_i32, %c0_i32_0 : i32, i32, i32
  }
  func.func @transform_8(%arg0: i32, %arg1: memref<2xi32, #tpu.memory_space<smem>>) -> (i32, i32, i32) {
    %0 = arith.index_cast %arg0 : i32 to index
    %1 = memref.load %arg1[%0] : memref<2xi32, #tpu.memory_space<smem>>
    %c0_i32 = arith.constant 0 : i32
    %c0_i32_0 = arith.constant 0 : i32
    %c0_i32_1 = arith.constant 0 : i32
    return %1, %c0_i32, %c0_i32_0 : i32, i32, i32
  }
  func.func @transform_9(%arg0: i32, %arg1: memref<2xi32, #tpu.memory_space<smem>>) -> (i32, i32, i32) {
    %0 = arith.index_cast %arg0 : i32 to index
    %1 = memref.load %arg1[%0] : memref<2xi32, #tpu.memory_space<smem>>
    %c0_i32 = arith.constant 0 : i32
    %c0_i32_0 = arith.constant 0 : i32
    %c0_i32_1 = arith.constant 0 : i32
    return %1, %c0_i32, %c0_i32_0 : i32, i32, i32
  }
  func.func @transform_10(%arg0: i32, %arg1: memref<2xi32, #tpu.memory_space<smem>>) -> (i32, i32, i32) {
    %0 = arith.index_cast %arg0 : i32 to index
    %1 = memref.load %arg1[%0] : memref<2xi32, #tpu.memory_space<smem>>
    %c0_i32 = arith.constant 0 : i32
    %c0_i32_0 = arith.constant 0 : i32
    %c0_i32_1 = arith.constant 0 : i32
    return %1, %c0_i32, %c0_i32_0 : i32, i32, i32
  }
  func.func @transform_11(%arg0: i32, %arg1: memref<2xi32, #tpu.memory_space<smem>>) -> (i32, i32, i32) {
    %0 = arith.index_cast %arg0 : i32 to index
    %1 = memref.load %arg1[%0] : memref<2xi32, #tpu.memory_space<smem>>
    %c0_i32 = arith.constant 0 : i32
    %c0_i32_0 = arith.constant 0 : i32
    %c0_i32_1 = arith.constant 0 : i32
    return %1, %c0_i32, %c0_i32_0 : i32, i32, i32
  }
  func.func @transform_12(%arg0: i32, %arg1: memref<2xi32, #tpu.memory_space<smem>>) -> (i32, i32, i32) {
    %c0_i32 = arith.constant 0 : i32
    %c0_i32_0 = arith.constant 0 : i32
    %c0_i32_1 = arith.constant 0 : i32
    %c0_i32_2 = arith.constant 0 : i32
    return %c0_i32, %c0_i32_0, %c0_i32_1 : i32, i32, i32
  }
  func.func @transform_13(%arg0: i32, %arg1: memref<2xi32, #tpu.memory_space<smem>>) -> (i32, i32, i32) {
    %c0_i32 = arith.constant 0 : i32
    %c0_i32_0 = arith.constant 0 : i32
    %c0_i32_1 = arith.constant 0 : i32
    %c0_i32_2 = arith.constant 0 : i32
    return %c0_i32, %c0_i32_0, %c0_i32_1 : i32, i32, i32
  }
}

</mosaic_0001>

<llo_original>
// kernel: tpu_custom_call.1
$region0: #{tpu_custom_call.1}
  #allocation0 [shape = 'u32[]', space=smem, size = 0x4, offset = 0x4, fixed_abs, tag = 'smem constant byte address 0x4 - core index']
  #allocation1 [shape = 'u32[144,128]{1,0:T(1,128)}', space=vmem, size = 0x12000, scoped, tag = 'internal scratch']
  #allocation2 [shape = 'f32[2,8,128]{2,1,0:T(8,128)}', space=vmem, size = 0x2000, scoped, tag = 'scratch operand']
  #allocation3 [shape = 'f32[2,8,128]{2,1,0:T(8,128)}', space=vmem, size = 0x2000, scoped, tag = 'scratch operand']
  #allocation4 [shape = 's32[1]{0}', space=sflag, size = 0x4, scoped, tag = 'scoped memory for tpu_custom_call.1']
  #allocation5 [shape = 'u8[512]{0}', space=smem, size = 0x200, scoped, tag = 'prefetched SMEM operand 0']
  #allocation24 [shape = 's32[]', space=sflag, size = 0x4, offset = 0, fixed_abs, tag = 'sflag constant byte address 0x0 - dummy sync flag']
  #allocation25 [shape = 's32[]', space=sflag, size = 0x4, offset = 0, fixed_abs, tag = 'sflag constant byte address 0x0 - dummy sync flag']
  #allocation26 [shape = 'u32[]', space=smem, size = 0x4, offset = 0x44, fixed_abs, tag = 'smem constant byte address 0x44 - assertion arg 0']
  #allocation27 [shape = 'u32[]', space=smem, size = 0x4, offset = 0x48, fixed_abs, tag = 'smem constant byte address 0x48 - assertion arg 1']
  #allocation29 [shape = 's32[]', space=sflag, size = 0x4, offset = 0, fixed_abs, tag = 'sflag constant byte address 0x0 - dummy sync flag']
  #allocation30 [shape = 's32[]', space=sflag, size = 0x4, offset = 0, fixed_abs, tag = 'sflag constant byte address 0x0 - dummy sync flag']
  %s0 = inlined_call_operand.hbm [shape: s32[2], index: 0, kind: input, shape index: {}]
  %s1 = inlined_call_operand.hbm [shape: f32[2,8,128], index: 1, kind: input, shape index: {}]
  %s2 = inlined_call_operand.vmem [shape: f32[2,8], index: 2, kind: input, shape index: {}]
  %s3 = inlined_call_operand.hbm [shape: f32[2,8,128], index: 3, kind: input, shape index: {}]
  %s4 = inlined_call_operand.vmem [shape: f32[2,8], index: 4, kind: input, shape index: {}]
  %s5 = inlined_call_operand.hbm [shape: bf16[4,128,384], index: 5, kind: input, shape index: {}]
  %s6 = inlined_call_operand.hbm [shape: bf16[4,128,384], index: 6, kind: input, shape index: {}]
  %s7 = inlined_call_operand.hbm [shape: bf16[4,128,128], index: 7, kind: input, shape index: {}]
  %s8 = inlined_call_operand.hbm [shape: bf16[4,128,128], index: 8, kind: input, shape index: {}]
  %s9 = inlined_call_operand.hbm [shape: bf16[4,128,256], index: 9, kind: input, shape index: {}]
  %s10 = inlined_call_operand.hbm [shape: bf16[4,256,128], index: 10, kind: input, shape index: {}]
  %s11 = inlined_call_operand.hbm [shape: bf16[4,128,256], index: 11, kind: input, shape index: {}]
  %s12 = inlined_call_operand.hbm [shape: bf16[4,256,128], index: 12, kind: input, shape index: {}]
  %s13 = inlined_call_operand.hbm [shape: f32[2,8,128], index: 13, kind: output, shape index: {0}]
  %s14 = inlined_call_operand.hbm [shape: f32[2,8,128], index: 14, kind: output, shape index: {1}]
  %15 = xla_tuple %s13, %s14
  %s16 = sld [smem:[#allocation0]]
  $region131: #{tpu_custom_call.1} parent=0
    _
  %s18 = ssub.s32 1, %s16
  %s19 = scalar_select 0, %s18, %s16
  %21 = dma.hbm_to_smem %s0, 16, [#allocation5], [#allocation4]
  %22 = dma.done [#allocation4], 16
  %23 = sfence
  $region1: #{tpu_custom_call.1} parent=0
    #allocation6 [shape = 'u8[196608]{0}', space=vmem, size = 0x30000, scoped, tag = 'input window, operand 5']
    #allocation7 [shape = 's32[2]{0}', space=sflag, size = 0x8, scoped, tag = 'scoped memory for tpu_custom_call.1']
    #allocation8 [shape = 's32[2]{0}', space=sflag, size = 0x8, scoped, tag = 'scoped memory for tpu_custom_call.1']
    #allocation9 [shape = 'u8[196608]{0}', space=vmem, size = 0x30000, scoped, tag = 'input window, operand 6']
    #allocation10 [shape = 's32[2]{0}', space=sflag, size = 0x8, scoped, tag = 'scoped memory for tpu_custom_call.1']
    #allocation11 [shape = 'u8[65536]{0}', space=vmem, size = 0x10000, scoped, tag = 'input window, operand 7']
    #allocation12 [shape = 'u8[65536]{0}', space=vmem, size = 0x10000, scoped, tag = 'input window, operand 8']
    #allocation13 [shape = 's32[2]{0}', space=sflag, size = 0x8, scoped, tag = 'scoped memory for tpu_custom_call.1']
    #allocation14 [shape = 'u8[131072]{0}', space=vmem, size = 0x20000, scoped, tag = 'input window, operand 9']
    #allocation15 [shape = 'u8[131072]{0}', space=vmem, size = 0x20000, scoped, tag = 'input window, operand 10']
    #allocation16 [shape = 's32[2]{0}', space=sflag, size = 0x8, scoped, tag = 'scoped memory for tpu_custom_call.1']
    #allocation17 [shape = 'u8[131072]{0}', space=vmem, size = 0x20000, scoped, tag = 'input window, operand 11']
    #allocation18 [shape = 'u8[131072]{0}', space=vmem, size = 0x20000, scoped, tag = 'input window, operand 12']
    #allocation19 [shape = 's32[2]{0}', space=sflag, size = 0x8, scoped, tag = 'scoped memory for tpu_custom_call.1']
    #allocation20 [shape = 'u8[8192]{0}', space=vmem, size = 0x2000, scoped, tag = 'output window, operand 0, single buffered']
    #allocation21 [shape = 'u8[8192]{0}', space=vmem, size = 0x2000, scoped, tag = 'output window, operand 1, single buffered']
    #allocation22 [shape = 's32[1]{0}', space=sflag, size = 0x4, scoped, tag = 'scoped memory for tpu_custom_call.1']
    %24 = vsyncpa [#allocation7], 0
    %s25 = scalar_lea.sflag [#allocation7], 1
    %26 = vsyncpa %s25, 0
    %27 = vsyncpa [#allocation10], 0
    %s28 = scalar_lea.sflag [#allocation10], 1
    %29 = vsyncpa %s28, 0
    %30 = vsyncpa [#allocation13], 0
    %s31 = scalar_lea.sflag [#allocation13], 1
    %32 = vsyncpa %s31, 0
    %33 = vsyncpa [#allocation16], 0
    %s34 = scalar_lea.sflag [#allocation16], 1
    %35 = vsyncpa %s34, 0
    %36 = vsyncpa [#allocation19], 0
    %s37 = scalar_lea.sflag [#allocation19], 1
    %38 = vsyncpa %s37, 0
    %39 = vsyncpa [#allocation8], 0
    %40 = vsyncpa [#allocation22], 0
    loop: start=0, step=1, limit=4
    $region2: #{tpu_custom_call.1} parent=1 // loop_pre_header
      _
    $region3: #{tpu_custom_call.1} parent=1 // loop_header
      %s42 = sphi 0, %s46
      %p43 = scmp.ge.s32.totalorder %s42, 4
      %s50 = sphi 0, %s50
      %s52 = sphi 0, %s50
      %s53 = sphi 0, %s52
      %s67 = sphi 0, %s53
      %s71 = sphi 0, %s71
      %s73 = sphi 0, %s71
      %s74 = sphi 0, %s73
      %s88 = sphi 0, %s74
      %s96 = sphi 0, %s98
      %s99 = sphi 0, %s96
      %s100 = sphi 0, %s99
      %s116 = sphi 0, %s100
      %s124 = sphi 0, %s126
      %s127 = sphi 0, %s124
      %s128 = sphi 0, %s127
      %s144 = sphi 0, %s128
      %s152 = sphi 0, %s154
      %s155 = sphi 0, %s152
      %s156 = sphi 0, %s155
      %s172 = sphi 0, %s156
      %s180 = sphi 0, %s182
      %s183 = sphi 0, %s180
      %s184 = sphi 0, %s183
      %s200 = sphi 0, %s184
      %s208 = sphi 0, %s210
      %s211 = sphi 0, %s208
      %s212 = sphi 0, %s211
      %s228 = sphi 0, %s212
      %s236 = sphi 0, %s238
      %s239 = sphi 0, %s236
      %s240 = sphi 0, %s239
      %s256 = sphi 0, %s240
      %s264 = sphi 0, %s266
      %s267 = sphi 0, %s264
      %s268 = sphi 0, %s267
      %s284 = sphi 0, %s268
      %s292 = sphi 0, %s294
      %s295 = sphi 0, %s292
      %s296 = sphi 0, %s295
      %s312 = sphi 0, %s296
      %s316 = sphi 0, %s316
      %s318 = sphi 0, %s316
      %s319 = sphi 0, %s318
      %s333 = sphi 0, %s319
      %s337 = sphi 0, %s337
      %s339 = sphi 0, %s337
      %s340 = sphi 0, %s339
      %s354 = sphi 0, %s340
    $region4: #{tpu_custom_call.1} parent=1 // loop_header_branch
      %45 = sbr.rel (%p43) target = $region8
    $region5: #{tpu_custom_call.1} parent=1 // loop_body
      %s47 = ssub.s32 %s42, 1
      %s48 = ssub.s32 %s42, 2
      %s49 = sadd.s32 %s42, 1
      %s51 = sadd.s32 %s50, 1
      %p54 = scmp.eq.s32.totalorder %s42, 1
      %p55 = scmp.ne.s32.totalorder %s50, %s52
      %p56 = scmp.eq.s32.totalorder %s42, 0
      %p57 = por %p55, %p56
      %p58 = scmp.ne.s32.totalorder %s50, %s52
      %p59 = scmp.eq.s32.totalorder %s47, 1
      %p60 = por %p58, %p59
      %p61 = scmp.ne.s32.totalorder %s52, %s53
      %p62 = scmp.eq.s32.totalorder %s47, 0
      %p63 = por %p61, %p62
      %p64 = scmp.ne.s32.totalorder %s52, %s53
      %p65 = scmp.eq.s32.totalorder %s48, 1
      %p66 = por %p64, %p65
      %p68 = scmp.ne.s32.totalorder %s53, %s67
      %p69 = scmp.eq.s32.totalorder %s48, 0
      %p70 = por %p68, %p69
      %s72 = sadd.s32 %s71, 1
      %p75 = scmp.eq.s32.totalorder %s42, 1
      %p76 = scmp.ne.s32.totalorder %s71, %s73
      %p77 = scmp.eq.s32.totalorder %s42, 0
      %p78 = por %p76, %p77
      %p79 = scmp.ne.s32.totalorder %s71, %s73
      %p80 = scmp.eq.s32.totalorder %s47, 1
      %p81 = por %p79, %p80
      %p82 = scmp.ne.s32.totalorder %s73, %s74
      %p83 = scmp.eq.s32.totalorder %s47, 0
      %p84 = por %p82, %p83
      %p85 = scmp.ne.s32.totalorder %s73, %s74
      %p86 = scmp.eq.s32.totalorder %s48, 1
      %p87 = por %p85, %p86
      %p89 = scmp.ne.s32.totalorder %s74, %s88
      %p90 = scmp.eq.s32.totalorder %s48, 0
      %p91 = por %p89, %p90
      %s92 = sld [smem:[#allocation5 + %s42]]
      %s93 = sld [smem:[#allocation5 + %s49]]
      %s94 = ssub.s32 %s92, %s93
      %p95 = scmp.eq.s32.totalorder %s94, 0
      %s97 = sadd.s32 %s96, 1
      %s98 = scalar_select %p95, %s96, %s97
      %p101 = pneg %p95
      %p102 = scmp.eq.s32.totalorder %s42, 1
      %p103 = por %p101, %p102
      %p104 = scmp.ne.s32.totalorder %s96, %s99
      %p105 = scmp.eq.s32.totalorder %s42, 0
      %p106 = por %p104, %p105
      %p107 = scmp.ne.s32.totalorder %s96, %s99
      %p108 = scmp.eq.s32.totalorder %s47, 1
      %p109 = por %p107, %p108
      %p110 = scmp.ne.s32.totalorder %s99, %s100
      %p111 = scmp.eq.s32.totalorder %s47, 0
      %p112 = por %p110, %p111
      %p113 = scmp.ne.s32.totalorder %s99, %s100
      %p114 = scmp.eq.s32.totalorder %s48, 1
      %p115 = por %p113, %p114
      %p117 = scmp.ne.s32.totalorder %s100, %s116
      %p118 = scmp.eq.s32.totalorder %s48, 0
      %p119 = por %p117, %p118
      %s120 = sld [smem:[#allocation5 + %s42]]
      %s121 = sld [smem:[#allocation5 + %s49]]
      %s122 = ssub.s32 %s120, %s121
      %p123 = scmp.eq.s32.totalorder %s122, 0
      %s125 = sadd.s32 %s124, 1
      %s126 = scalar_select %p123, %s124, %s125
      %p129 = pneg %p123
      %p130 = scmp.eq.s32.totalorder %s42, 1
      %p131 = por %p129, %p130
      %p132 = scmp.ne.s32.totalorder %s124, %s127
      %p133 = scmp.eq.s32.totalorder %s42, 0
      %p134 = por %p132, %p133
      %p135 = scmp.ne.s32.totalorder %s124, %s127
      %p136 = scmp.eq.s32.totalorder %s47, 1
      %p137 = por %p135, %p136
      %p138 = scmp.ne.s32.totalorder %s127, %s128
      %p139 = scmp.eq.s32.totalorder %s47, 0
      %p140 = por %p138, %p139
      %p141 = scmp.ne.s32.totalorder %s127, %s128
      %p142 = scmp.eq.s32.totalorder %s48, 1
      %p143 = por %p141, %p142
      %p145 = scmp.ne.s32.totalorder %s128, %s144
      %p146 = scmp.eq.s32.totalorder %s48, 0
      %p147 = por %p145, %p146
      %s148 = sld [smem:[#allocation5 + %s42]]
      %s149 = sld [smem:[#allocation5 + %s49]]
      %s150 = ssub.s32 %s148, %s149
      %p151 = scmp.eq.s32.totalorder %s150, 0
      %s153 = sadd.s32 %s152, 1
      %s154 = scalar_select %p151, %s152, %s153
      %p157 = pneg %p151
      %p158 = scmp.eq.s32.totalorder %s42, 1
      %p159 = por %p157, %p158
      %p160 = scmp.ne.s32.totalorder %s152, %s155
      %p161 = scmp.eq.s32.totalorder %s42, 0
      %p162 = por %p160, %p161
      %p163 = scmp.ne.s32.totalorder %s152, %s155
      %p164 = scmp.eq.s32.totalorder %s47, 1
      %p165 = por %p163, %p164
      %p166 = scmp.ne.s32.totalorder %s155, %s156
      %p167 = scmp.eq.s32.totalorder %s47, 0
      %p168 = por %p166, %p167
      %p169 = scmp.ne.s32.totalorder %s155, %s156
      %p170 = scmp.eq.s32.totalorder %s48, 1
      %p171 = por %p169, %p170
      %p173 = scmp.ne.s32.totalorder %s156, %s172
      %p174 = scmp.eq.s32.totalorder %s48, 0
      %p175 = por %p173, %p174
      %s176 = sld [smem:[#allocation5 + %s42]]
      %s177 = sld [smem:[#allocation5 + %s49]]
      %s178 = ssub.s32 %s176, %s177
      %p179 = scmp.eq.s32.totalorder %s178, 0
      %s181 = sadd.s32 %s180, 1
      %s182 = scalar_select %p179, %s180, %s181
      %p185 = pneg %p179
      %p186 = scmp.eq.s32.totalorder %s42, 1
      %p187 = por %p185, %p186
      %p188 = scmp.ne.s32.totalorder %s180, %s183
      %p189 = scmp.eq.s32.totalorder %s42, 0
      %p190 = por %p188, %p189
      %p191 = scmp.ne.s32.totalorder %s180, %s183
      %p192 = scmp.eq.s32.totalorder %s47, 1
      %p193 = por %p191, %p192
      %p194 = scmp.ne.s32.totalorder %s183, %s184
      %p195 = scmp.eq.s32.totalorder %s47, 0
      %p196 = por %p194, %p195
      %p197 = scmp.ne.s32.totalorder %s183, %s184
      %p198 = scmp.eq.s32.totalorder %s48, 1
      %p199 = por %p197, %p198
      %p201 = scmp.ne.s32.totalorder %s184, %s200
      %p202 = scmp.eq.s32.totalorder %s48, 0
      %p203 = por %p201, %p202
      %s204 = sld [smem:[#allocation5 + %s42]]
      %s205 = sld [smem:[#allocation5 + %s49]]
      %s206 = ssub.s32 %s204, %s205
      %p207 = scmp.eq.s32.totalorder %s206, 0
      %s209 = sadd.s32 %s208, 1
      %s210 = scalar_select %p207, %s208, %s209
      %p213 = pneg %p207
      %p214 = scmp.eq.s32.totalorder %s42, 1
      %p215 = por %p213, %p214
      %p216 = scmp.ne.s32.totalorder %s208, %s211
      %p217 = scmp.eq.s32.totalorder %s42, 0
      %p218 = por %p216, %p217
      %p219 = scmp.ne.s32.totalorder %s208, %s211
      %p220 = scmp.eq.s32.totalorder %s47, 1
      %p221 = por %p219, %p220
      %p222 = scmp.ne.s32.totalorder %s211, %s212
      %p223 = scmp.eq.s32.totalorder %s47, 0
      %p224 = por %p222, %p223
      %p225 = scmp.ne.s32.totalorder %s211, %s212
      %p226 = scmp.eq.s32.totalorder %s48, 1
      %p227 = por %p225, %p226
      %p229 = scmp.ne.s32.totalorder %s212, %s228
      %p230 = scmp.eq.s32.totalorder %s48, 0
      %p231 = por %p229, %p230
      %s232 = sld [smem:[#allocation5 + %s42]]
      %s233 = sld [smem:[#allocation5 + %s49]]
      %s234 = ssub.s32 %s232, %s233
      %p235 = scmp.eq.s32.totalorder %s234, 0
      %s237 = sadd.s32 %s236, 1
      %s238 = scalar_select %p235, %s236, %s237
      %p241 = pneg %p235
      %p242 = scmp.eq.s32.totalorder %s42, 1
      %p243 = por %p241, %p242
      %p244 = scmp.ne.s32.totalorder %s236, %s239
      %p245 = scmp.eq.s32.totalorder %s42, 0
      %p246 = por %p244, %p245
      %p247 = scmp.ne.s32.totalorder %s236, %s239
      %p248 = scmp.eq.s32.totalorder %s47, 1
      %p249 = por %p247, %p248
      %p250 = scmp.ne.s32.totalorder %s239, %s240
      %p251 = scmp.eq.s32.totalorder %s47, 0
      %p252 = por %p250, %p251
      %p253 = scmp.ne.s32.totalorder %s239, %s240
      %p254 = scmp.eq.s32.totalorder %s48, 1
      %p255 = por %p253, %p254
      %p257 = scmp.ne.s32.totalorder %s240, %s256
      %p258 = scmp.eq.s32.totalorder %s48, 0
      %p259 = por %p257, %p258
      %s260 = sld [smem:[#allocation5 + %s42]]
      %s261 = sld [smem:[#allocation5 + %s49]]
      %s262 = ssub.s32 %s260, %s261
      %p263 = scmp.eq.s32.totalorder %s262, 0
      %s265 = sadd.s32 %s264, 1
      %s266 = scalar_select %p263, %s264, %s265
      %p269 = pneg %p263
      %p270 = scmp.eq.s32.totalorder %s42, 1
      %p271 = por %p269, %p270
      %p272 = scmp.ne.s32.totalorder %s264, %s267
      %p273 = scmp.eq.s32.totalorder %s42, 0
      %p274 = por %p272, %p273
      %p275 = scmp.ne.s32.totalorder %s264, %s267
      %p276 = scmp.eq.s32.totalorder %s47, 1
      %p277 = por %p275, %p276
      %p278 = scmp.ne.s32.totalorder %s267, %s268
      %p279 = scmp.eq.s32.totalorder %s47, 0
      %p280 = por %p278, %p279
      %p281 = scmp.ne.s32.totalorder %s267, %s268
      %p282 = scmp.eq.s32.totalorder %s48, 1
      %p283 = por %p281, %p282
      %p285 = scmp.ne.s32.totalorder %s268, %s284
      %p286 = scmp.eq.s32.totalorder %s48, 0
      %p287 = por %p285, %p286
      %s288 = sld [smem:[#allocation5 + %s42]]
      %s289 = sld [smem:[#allocation5 + %s49]]
      %s290 = ssub.s32 %s288, %s289
      %p291 = scmp.eq.s32.totalorder %s290, 0
      %s293 = sadd.s32 %s292, 1
      %s294 = scalar_select %p291, %s292, %s293
      %p297 = pneg %p291
      %p298 = scmp.eq.s32.totalorder %s42, 1
      %p299 = por %p297, %p298
      %p300 = scmp.ne.s32.totalorder %s292, %s295
      %p301 = scmp.eq.s32.totalorder %s42, 0
      %p302 = por %p300, %p301
      %p303 = scmp.ne.s32.totalorder %s292, %s295
      %p304 = scmp.eq.s32.totalorder %s47, 1
      %p305 = por %p303, %p304
      %p306 = scmp.ne.s32.totalorder %s295, %s296
      %p307 = scmp.eq.s32.totalorder %s47, 0
      %p308 = por %p306, %p307
      %p309 = scmp.ne.s32.totalorder %s295, %s296
      %p310 = scmp.eq.s32.totalorder %s48, 1
      %p311 = por %p309, %p310
      %p313 = scmp.ne.s32.totalorder %s296, %s312
      %p314 = scmp.eq.s32.totalorder %s48, 0
      %p315 = por %p313, %p314
      %s317 = sadd.s32 %s316, 1
      %p320 = scmp.eq.s32.totalorder %s42, 1
      %p321 = scmp.ne.s32.totalorder %s316, %s318
      %p322 = scmp.eq.s32.totalorder %s42, 0
      %p323 = por %p321, %p322
      %p324 = scmp.ne.s32.totalorder %s316, %s318
      %p325 = scmp.eq.s32.totalorder %s47, 1
      %p326 = por %p324, %p325
      %p327 = scmp.ne.s32.totalorder %s318, %s319
      %p328 = scmp.eq.s32.totalorder %s47, 0
      %p329 = por %p327, %p328
      %p330 = scmp.ne.s32.totalorder %s318, %s319
      %p331 = scmp.eq.s32.totalorder %s48, 1
      %p332 = por %p330, %p331
      %p334 = scmp.ne.s32.totalorder %s319, %s333
      %p335 = scmp.eq.s32.totalorder %s48, 0
      %p336 = por %p334, %p335
      %s338 = sadd.s32 %s337, 1
      %p341 = scmp.eq.s32.totalorder %s42, 1
      %p342 = scmp.ne.s32.totalorder %s337, %s339
      %p343 = scmp.eq.s32.totalorder %s42, 0
      %p344 = por %p342, %p343
      %p345 = scmp.ne.s32.totalorder %s337, %s339
      %p346 = scmp.eq.s32.totalorder %s47, 1
      %p347 = por %p345, %p346
      %p348 = scmp.ne.s32.totalorder %s339, %s340
      %p349 = scmp.eq.s32.totalorder %s47, 0
      %p350 = por %p348, %p349
      %p351 = scmp.ne.s32.totalorder %s339, %s340
      %p352 = scmp.eq.s32.totalorder %s48, 1
      %p353 = por %p351, %p352
      %p355 = scmp.ne.s32.totalorder %s340, %s354
      %p356 = scmp.eq.s32.totalorder %s48, 0
      %p357 = por %p355, %p356
      %p358 = scmp.le.s32.totalorder 1, %s42
      %p359 = scmp.lt.s32.totalorder %s42, 3
      %p360 = pnand %p358, %p359
      %p361 = pneg %p360
      // Predicated region
      $region9: #{tpu_custom_call.1} parent=5 // pred_check
        _
      $region10: #{tpu_custom_call.1} parent=5 // pred_check_branch
        %363 = sbr.rel (%p360) target = $region12
      $region11: #{tpu_custom_call.1} parent=5 // pred_region
        %s364 = ssub.s32 %s42, 1
        // Predicated region
        $region13: #{tpu_custom_call.1} parent=11 // pred_check
          %p365 = pneg %p63
        $region14: #{tpu_custom_call.1} parent=11 // pred_check_branch
          %367 = sbr.rel (%p365) target = $region16
        $region15: #{tpu_custom_call.1} parent=11 // pred_region
          _
        $region16: #{tpu_custom_call.1} parent=11 // pred_fallthru
          _
        // Predicated region
        $region17: #{tpu_custom_call.1} parent=11 // pred_check
          %p368 = pneg %p84
        $region18: #{tpu_custom_call.1} parent=11 // pred_check_branch
          %370 = sbr.rel (%p368) target = $region20
        $region19: #{tpu_custom_call.1} parent=11 // pred_region
          _
        $region20: #{tpu_custom_call.1} parent=11 // pred_fallthru
          _
      $region12: #{tpu_custom_call.1} parent=5 // pred_fallthru
        _
      %p371 = scmp.lt.s32.totalorder %s42, 2
      // Predicated region
      $region21: #{tpu_custom_call.1} parent=5 // pred_check
        %p372 = pneg %p371
      $region22: #{tpu_custom_call.1} parent=5 // pred_check_branch
        %374 = sbr.rel (%p372) target = $region24
      $region23: #{tpu_custom_call.1} parent=5 // pred_region
        // Predicated region
        $region25: #{tpu_custom_call.1} parent=23 // pred_check
          %p375 = pneg %p106
        $region26: #{tpu_custom_call.1} parent=23 // pred_check_branch
          %377 = sbr.rel (%p375) target = $region28
        $region27: #{tpu_custom_call.1} parent=23 // pred_region
          %s378 = sand.u32 %s96, 1
          %s379 = scalar_lea.sflag [#allocation7], %s378
          %s380 = sand.u32 %s96, 1
          %s381 = smul.addr %s380, 192
          %s382 = scalar_lea.vmem [#allocation6], %s381
          %s383 = sld [smem:[#allocation5 + %s42]]
          %s385 = ssub.s32 3072, 3072
          %386 = vsyncadd %s379, %s385
          %s387 = smul.addr %s383, 48
          %s388 = smul.addr %s387, 64
          %s389 = scalar_lea.hbm %s5, %s388
          %s390 = sshll.u32 %s382, 4
          %s391 = int_to_ptr.vmem [resolvable:$true] %s390
          %396 = dma.hbm_to_vmem [thread:$0]  %s389, 3072, %s391, %s379, 192, 192, 12
        $region28: #{tpu_custom_call.1} parent=23 // pred_fallthru
          _
        // Predicated region
        $region29: #{tpu_custom_call.1} parent=23 // pred_check
          %p397 = pneg %p134
        $region30: #{tpu_custom_call.1} parent=23 // pred_check_branch
          %399 = sbr.rel (%p397) target = $region32
        $region31: #{tpu_custom_call.1} parent=23 // pred_region
          %s400 = sand.u32 %s42, 1
          %s401 = scalar_lea.sflag [#allocation10], %s400
          %s402 = sand.u32 %s124, 1
          %s403 = smul.addr %s402, 192
          %s404 = scalar_lea.vmem [#allocation9], %s403
          %s405 = sld [smem:[#allocation5 + %s42]]
          %s407 = ssub.s32 3072, 3072
          %408 = vsyncadd %s401, %s407
          %s409 = smul.addr %s405, 48
          %s410 = smul.addr %s409, 64
          %s411 = scalar_lea.hbm %s6, %s410
          %s412 = sshll.u32 %s404, 4
          %s413 = int_to_ptr.vmem [resolvable:$true] %s412
          %418 = dma.hbm_to_vmem [thread:$0]  %s411, 3072, %s413, %s401, 192, 192, 12
        $region32: #{tpu_custom_call.1} parent=23 // pred_fallthru
          _
        // Predicated region
        $region33: #{tpu_custom_call.1} parent=23 // pred_check
          %p419 = pneg %p162
        $region34: #{tpu_custom_call.1} parent=23 // pred_check_branch
          %421 = sbr.rel (%p419) target = $region36
        $region35: #{tpu_custom_call.1} parent=23 // pred_region
          %s422 = sand.u32 %s42, 1
          %s423 = scalar_lea.sflag [#allocation10], %s422
          %s424 = sand.u32 %s152, 1
          %s425 = smul.addr %s424, 64
          %s426 = scalar_lea.vmem [#allocation11], %s425
          %s427 = sld [smem:[#allocation5 + %s42]]
          %s429 = ssub.s32 1024, 1024
          %430 = vsyncadd %s423, %s429
          %s431 = smul.addr %s427, 16
          %s432 = smul.addr %s431, 64
          %s433 = scalar_lea.hbm %s7, %s432
          %s434 = sshll.u32 %s426, 4
          %s435 = int_to_ptr.vmem [resolvable:$true] %s434
          %440 = dma.hbm_to_vmem [thread:$0]  %s433, 1024, %s435, %s423, 64, 64, 4
        $region36: #{tpu_custom_call.1} parent=23 // pred_fallthru
          _
        // Predicated region
        $region37: #{tpu_custom_call.1} parent=23 // pred_check
          %p441 = pneg %p190
        $region38: #{tpu_custom_call.1} parent=23 // pred_check_branch
          %443 = sbr.rel (%p441) target = $region40
        $region39: #{tpu_custom_call.1} parent=23 // pred_region
          %s444 = sand.u32 %s42, 1
          %s445 = scalar_lea.sflag [#allocation13], %s444
          %s446 = sand.u32 %s180, 1
          %s447 = smul.addr %s446, 64
          %s448 = scalar_lea.vmem [#allocation12], %s447
          %s449 = sld [smem:[#allocation5 + %s42]]
          %s451 = ssub.s32 1024, 1024
          %452 = vsyncadd %s445, %s451
          %s453 = smul.addr %s449, 16
          %s454 = smul.addr %s453, 64
          %s455 = scalar_lea.hbm %s8, %s454
          %s456 = sshll.u32 %s448, 4
          %s457 = int_to_ptr.vmem [resolvable:$true] %s456
          %462 = dma.hbm_to_vmem [thread:$0]  %s455, 1024, %s457, %s445, 64, 64, 4
        $region40: #{tpu_custom_call.1} parent=23 // pred_fallthru
          _
        // Predicated region
        $region41: #{tpu_custom_call.1} parent=23 // pred_check
          %p463 = pneg %p218
        $region42: #{tpu_custom_call.1} parent=23 // pred_check_branch
          %465 = sbr.rel (%p463) target = $region44
        $region43: #{tpu_custom_call.1} parent=23 // pred_region
          %s466 = sand.u32 %s42, 1
          %s467 = scalar_lea.sflag [#allocation13], %s466
          %s468 = sand.u32 %s208, 1
          %s469 = smul.addr %s468, 128
          %s470 = scalar_lea.vmem [#allocation14], %s469
          %s471 = sld [smem:[#allocation5 + %s42]]
          %s473 = ssub.s32 2048, 2048
          %474 = vsyncadd %s467, %s473
          %s475 = smul.addr %s471, 32
          %s476 = smul.addr %s475, 64
          %s477 = scalar_lea.hbm %s9, %s476
          %s478 = sshll.u32 %s470, 4
          %s479 = int_to_ptr.vmem [resolvable:$true] %s478
          %484 = dma.hbm_to_vmem [thread:$0]  %s477, 2048, %s479, %s467, 128, 128, 8
        $region44: #{tpu_custom_call.1} parent=23 // pred_fallthru
          _
        // Predicated region
        $region45: #{tpu_custom_call.1} parent=23 // pred_check
          %p485 = pneg %p246
        $region46: #{tpu_custom_call.1} parent=23 // pred_check_branch
          %487 = sbr.rel (%p485) target = $region48
        $region47: #{tpu_custom_call.1} parent=23 // pred_region
          %s488 = sand.u32 %s42, 1
          %s489 = scalar_lea.sflag [#allocation16], %s488
          %s490 = sand.u32 %s236, 1
          %s491 = smul.addr %s490, 128
          %s492 = scalar_lea.vmem [#allocation15], %s491
          %s493 = sld [smem:[#allocation5 + %s42]]
          %s495 = ssub.s32 2048, 2048
          %496 = vsyncadd %s489, %s495
          %s497 = smul.addr %s493, 32
          %s498 = smul.addr %s497, 64
          %s499 = scalar_lea.hbm %s10, %s498
          %s500 = sshll.u32 %s492, 4
          %s501 = int_to_ptr.vmem [resolvable:$true] %s500
          %506 = dma.hbm_to_vmem [thread:$0]  %s499, 2048, %s501, %s489, 64, 64, 4
        $region48: #{tpu_custom_call.1} parent=23 // pred_fallthru
          _
        // Predicated region
        $region49: #{tpu_custom_call.1} parent=23 // pred_check
          %p507 = pneg %p274
        $region50: #{tpu_custom_call.1} parent=23 // pred_check_branch
          %509 = sbr.rel (%p507) target = $region52
        $region51: #{tpu_custom_call.1} parent=23 // pred_region
          %s510 = sand.u32 %s42, 1
          %s511 = scalar_lea.sflag [#allocation16], %s510
          %s512 = sand.u32 %s264, 1
          %s513 = smul.addr %s512, 128
          %s514 = scalar_lea.vmem [#allocation17], %s513
          %s515 = sld [smem:[#allocation5 + %s42]]
          %s517 = ssub.s32 2048, 2048
          %518 = vsyncadd %s511, %s517
          %s519 = smul.addr %s515, 32
          %s520 = smul.addr %s519, 64
          %s521 = scalar_lea.hbm %s11, %s520
          %s522 = sshll.u32 %s514, 4
          %s523 = int_to_ptr.vmem [resolvable:$true] %s522
          %528 = dma.hbm_to_vmem [thread:$0]  %s521, 2048, %s523, %s511, 128, 128, 8
        $region52: #{tpu_custom_call.1} parent=23 // pred_fallthru
          _
        // Predicated region
        $region53: #{tpu_custom_call.1} parent=23 // pred_check
          %p529 = pneg %p302
        $region54: #{tpu_custom_call.1} parent=23 // pred_check_branch
          %531 = sbr.rel (%p529) target = $region56
        $region55: #{tpu_custom_call.1} parent=23 // pred_region
          %s532 = sand.u32 %s292, 1
          %s533 = scalar_lea.sflag [#allocation19], %s532
          %s534 = sand.u32 %s292, 1
          %s535 = smul.addr %s534, 128
          %s536 = scalar_lea.vmem [#allocation18], %s535
          %s537 = sld [smem:[#allocation5 + %s42]]
          %s539 = ssub.s32 2048, 2048
          %540 = vsyncadd %s533, %s539
          %s541 = smul.addr %s537, 32
          %s542 = smul.addr %s541, 64
          %s543 = scalar_lea.hbm %s12, %s542
          %s544 = sshll.u32 %s536, 4
          %s545 = int_to_ptr.vmem [resolvable:$true] %s544
          %550 = dma.hbm_to_vmem [thread:$0]  %s543, 2048, %s545, %s533, 64, 64, 4
        $region56: #{tpu_custom_call.1} parent=23 // pred_fallthru
          _
      $region24: #{tpu_custom_call.1} parent=5 // pred_fallthru
        _
      %p551 = scmp.le.s32.totalorder 1, %s42
      %p552 = scmp.lt.s32.totalorder %s42, 3
      %p553 = pnand %p551, %p552
      %p554 = pneg %p553
      // Predicated region
      $region57: #{tpu_custom_call.1} parent=5 // pred_check
        _
      $region58: #{tpu_custom_call.1} parent=5 // pred_check_branch
        %556 = sbr.rel (%p553) target = $region60
      $region59: #{tpu_custom_call.1} parent=5 // pred_region
        %s557 = ssub.s32 %s42, 1
        %s558 = sand.u32 %s99, 1
        %s559 = scalar_lea.sflag [#allocation7], %s558
        %s560 = sand.u32 %s99, 1
        %s561 = smul.addr %s560, 192
        %s562 = scalar_lea.vmem [#allocation6], %s561
        // Predicated region
        $region61: #{tpu_custom_call.1} parent=59 // pred_check
          %p563 = pneg %p112
        $region62: #{tpu_custom_call.1} parent=59 // pred_check_branch
          %565 = sbr.rel (%p563) target = $region64
        $region63: #{tpu_custom_call.1} parent=59 // pred_region
          %566 = dma.done %s559, 3072
        $region64: #{tpu_custom_call.1} parent=59 // pred_fallthru
          _
        %s567 = sand.u32 %s47, 1
        %s568 = scalar_lea.sflag [#allocation10], %s567
        %s569 = sand.u32 %s127, 1
        %s570 = smul.addr %s569, 192
        %s571 = scalar_lea.vmem [#allocation9], %s570
        // Predicated region
        $region65: #{tpu_custom_call.1} parent=59 // pred_check
          %p572 = pneg %p140
        $region66: #{tpu_custom_call.1} parent=59 // pred_check_branch
          %574 = sbr.rel (%p572) target = $region68
        $region67: #{tpu_custom_call.1} parent=59 // pred_region
          %575 = dma.done %s568, 3072
        $region68: #{tpu_custom_call.1} parent=59 // pred_fallthru
          _
        %s576 = sand.u32 %s47, 1
        %s577 = scalar_lea.sflag [#allocation10], %s576
        %s578 = sand.u32 %s155, 1
        %s579 = smul.addr %s578, 64
        %s580 = scalar_lea.vmem [#allocation11], %s579
        // Predicated region
        $region69: #{tpu_custom_call.1} parent=59 // pred_check
          %p581 = pneg %p168
        $region70: #{tpu_custom_call.1} parent=59 // pred_check_branch
          %583 = sbr.rel (%p581) target = $region72
        $region71: #{tpu_custom_call.1} parent=59 // pred_region
          %584 = dma.done %s577, 1024
        $region72: #{tpu_custom_call.1} parent=59 // pred_fallthru
          _
        %s585 = sand.u32 %s47, 1
        %s586 = scalar_lea.sflag [#allocation13], %s585
        %s587 = sand.u32 %s183, 1
        %s588 = smul.addr %s587, 64
        %s589 = scalar_lea.vmem [#allocation12], %s588
        // Predicated region
        $region73: #{tpu_custom_call.1} parent=59 // pred_check
          %p590 = pneg %p196
        $region74: #{tpu_custom_call.1} parent=59 // pred_check_branch
          %592 = sbr.rel (%p590) target = $region76
        $region75: #{tpu_custom_call.1} parent=59 // pred_region
          %593 = dma.done %s586, 1024
        $region76: #{tpu_custom_call.1} parent=59 // pred_fallthru
          _
        %s594 = sand.u32 %s47, 1
        %s595 = scalar_lea.sflag [#allocation13], %s594
        %s596 = sand.u32 %s211, 1
        %s597 = smul.addr %s596, 128
        %s598 = scalar_lea.vmem [#allocation14], %s597
        // Predicated region
        $region77: #{tpu_custom_call.1} parent=59 // pred_check
          %p599 = pneg %p224
        $region78: #{tpu_custom_call.1} parent=59 // pred_check_branch
          %601 = sbr.rel (%p599) target = $region80
        $region79: #{tpu_custom_call.1} parent=59 // pred_region
          %602 = dma.done %s595, 2048
        $region80: #{tpu_custom_call.1} parent=59 // pred_fallthru
          _
        %s603 = sand.u32 %s47, 1
        %s604 = scalar_lea.sflag [#allocation16], %s603
        %s605 = sand.u32 %s239, 1
        %s606 = smul.addr %s605, 128
        %s607 = scalar_lea.vmem [#allocation15], %s606
        // Predicated region
        $region81: #{tpu_custom_call.1} parent=59 // pred_check
          %p608 = pneg %p252
        $region82: #{tpu_custom_call.1} parent=59 // pred_check_branch
          %610 = sbr.rel (%p608) target = $region84
        $region83: #{tpu_custom_call.1} parent=59 // pred_region
          %611 = dma.done %s604, 2048
        $region84: #{tpu_custom_call.1} parent=59 // pred_fallthru
          _
        %s612 = sand.u32 %s47, 1
        %s613 = scalar_lea.sflag [#allocation16], %s612
        %s614 = sand.u32 %s267, 1
        %s615 = smul.addr %s614, 128
        %s616 = scalar_lea.vmem [#allocation17], %s615
        // Predicated region
        $region85: #{tpu_custom_call.1} parent=59 // pred_check
          %p617 = pneg %p280
        $region86: #{tpu_custom_call.1} parent=59 // pred_check_branch
          %619 = sbr.rel (%p617) target = $region88
        $region87: #{tpu_custom_call.1} parent=59 // pred_region
          %620 = dma.done %s613, 2048
        $region88: #{tpu_custom_call.1} parent=59 // pred_fallthru
          _
        %s621 = sand.u32 %s295, 1
        %s622 = scalar_lea.sflag [#allocation19], %s621
        %s623 = sand.u32 %s295, 1
        %s624 = smul.addr %s623, 128
        %s625 = scalar_lea.vmem [#allocation18], %s624
        // Predicated region
        $region89: #{tpu_custom_call.1} parent=59 // pred_check
          %p626 = pneg %p308
        $region90: #{tpu_custom_call.1} parent=59 // pred_check_branch
          %628 = sbr.rel (%p626) target = $region92
        $region91: #{tpu_custom_call.1} parent=59 // pred_region
          %629 = dma.done %s622, 2048
        $region92: #{tpu_custom_call.1} parent=59 // pred_fallthru
          _
        %p630 = pneg %p63
        %p631 = pneg %p60
        %p632 = pneg %p84
        %p633 = pneg %p81
        %s634 = sand.u32 %s99, 1
        %s635 = scalar_lea.sflag [#allocation7], %s634
        %s636 = sand.u32 %s99, 1
        %s637 = smul.addr %s636, 192
        %s638 = scalar_lea.vmem [#allocation6], %s637
        %p639 = pneg %p112
        %p640 = pneg %p109
        %s641 = sand.u32 %s47, 1
        %s642 = scalar_lea.sflag [#allocation10], %s641
        %s643 = sand.u32 %s127, 1
        %s644 = smul.addr %s643, 192
        %s645 = scalar_lea.vmem [#allocation9], %s644
        %p646 = pneg %p140
        %p647 = pneg %p137
        %s648 = sand.u32 %s47, 1
        %s649 = scalar_lea.sflag [#allocation10], %s648
        %s650 = sand.u32 %s155, 1
        %s651 = smul.addr %s650, 64
        %s652 = scalar_lea.vmem [#allocation11], %s651
        %p653 = pneg %p168
        %p654 = pneg %p165
        %s655 = sand.u32 %s47, 1
        %s656 = scalar_lea.sflag [#allocation13], %s655
        %s657 = sand.u32 %s183, 1
        %s658 = smul.addr %s657, 64
        %s659 = scalar_lea.vmem [#allocation12], %s658
        %p660 = pneg %p196
        %p661 = pneg %p193
        %s662 = sand.u32 %s47, 1
        %s663 = scalar_lea.sflag [#allocation13], %s662
        %s664 = sand.u32 %s211, 1
        %s665 = smul.addr %s664, 128
        %s666 = scalar_lea.vmem [#allocation14], %s665
        %p667 = pneg %p224
        %p668 = pneg %p221
        %s669 = sand.u32 %s47, 1
        %s670 = scalar_lea.sflag [#allocation16], %s669
        %s671 = sand.u32 %s239, 1
        %s672 = smul.addr %s671, 128
        %s673 = scalar_lea.vmem [#allocation15], %s672
        %p674 = pneg %p252
        %p675 = pneg %p249
        %s676 = sand.u32 %s47, 1
        %s677 = scalar_lea.sflag [#allocation16], %s676
        %s678 = sand.u32 %s267, 1
        %s679 = smul.addr %s678, 128
        %s680 = scalar_lea.vmem [#allocation17], %s679
        %p681 = pneg %p280
        %p682 = pneg %p277
        %s683 = sand.u32 %s295, 1
        %s684 = scalar_lea.sflag [#allocation19], %s683
        %s685 = sand.u32 %s295, 1
        %s686 = smul.addr %s685, 128
        %s687 = scalar_lea.vmem [#allocation18], %s686
        %p688 = pneg %p308
        %p689 = pneg %p305
        %p690 = pneg %p329
        %p691 = pneg %p326
        %p692 = pneg %p350
        %p693 = pneg %p347
        %s694 = sld [smem:[#allocation5 + %s47]]
        %s695 = sld [smem:[#allocation5 + %s47]]
        %s696 = sld [smem:[#allocation5 + %s47]]
        %s697 = sld [smem:[#allocation5 + %s47]]
        %s698 = sld [smem:[#allocation5 + %s47]]
        %s699 = sld [smem:[#allocation5 + %s47]]
        %s700 = sld [smem:[#allocation5 + %s47]]
        %s701 = sld [smem:[#allocation5 + %s47]]
        %p703 = scmp.eq.s32.totalorder %s47, 0
        // Predicated region
        $region93: #{tpu_custom_call.1} parent=59 // pred_check
          %p704 = pneg %p703
        $region94: #{tpu_custom_call.1} parent=59 // pred_check_branch
          %706 = sbr.rel (%p704) target = $region96
        $region95: #{tpu_custom_call.1} parent=59 // pred_region
          $region97: #{tpu_custom_call.1} parent=95
            #allocation23 [shape = 's32[1]{0}', space=sflag, size = 0x4, scoped, tag = 'scoped memory for tpu_custom_call.1']
            // Predicated region
            $region98: #{tpu_custom_call.1} parent=97 // pred_check
              _
            $region99: #{tpu_custom_call.1} parent=97 // pred_check_branch
              %708 = sbr.rel target = $region101
            $region100: #{tpu_custom_call.1} parent=97 // pred_region
              %709 = sst [smem:[#allocation26]] [#allocation25]
              %710 = sst [smem:[#allocation27]] [#allocation24]
            $region101: #{tpu_custom_call.1} parent=97 // pred_fallthru
              _
            %712 = shalt.err (0)
            %s714 = sshll.u32 [#allocation2], 4
            %s715 = int_to_ptr.vmem [resolvable:$true] %s714
            %717 = dma.hbm_to_vmem [thread:$0]  %s1, 256, %s715, [#allocation23]
            %s718 = smul.u32 2, 8
            %s719 = smul.u32 %s718, 1
            %s720 = sshll.u32 %s719, 4
            %721 = dma.done [#allocation23], %s720
          $region102: #{tpu_custom_call.1} parent=95
            #allocation28 [shape = 's32[1]{0}', space=sflag, size = 0x4, scoped, tag = 'scoped memory for tpu_custom_call.1']
            // Predicated region
            $region103: #{tpu_custom_call.1} parent=102 // pred_check
              _
            $region104: #{tpu_custom_call.1} parent=102 // pred_check_branch
              %723 = sbr.rel target = $region106
            $region105: #{tpu_custom_call.1} parent=102 // pred_region
              %724 = sst [smem:[#allocation26]] [#allocation30]
              %725 = sst [smem:[#allocation27]] [#allocation29]
            $region106: #{tpu_custom_call.1} parent=102 // pred_fallthru
              _
            %727 = shalt.err (0)
            %s729 = sshll.u32 [#allocation3], 4
            %s730 = int_to_ptr.vmem [resolvable:$true] %s729
            %732 = dma.hbm_to_vmem [thread:$0]  %s3, 256, %s730, [#allocation28]
            %s733 = smul.u32 2, 8
            %s734 = smul.u32 %s733, 1
            %s735 = sshll.u32 %s734, 4
            %736 = dma.done [#allocation28], %s735
        $region96: #{tpu_custom_call.1} parent=59 // pred_fallthru
          _
        %v737 = vld [vmem:[#allocation2] sm:$0xff]
        %v738 = vld [vmem:[#allocation2 + $0x8] sm:$0xff]
        %v739 = vld [vmem:[#allocation3] sm:$0xff]
        %v740 = vld [vmem:[#allocation3 + $0x8] sm:$0xff]
        %v741 = vld [vmem:[%s2] sm:$0x3]
        %v742 = vld [vmem:[%s4] sm:$0x3]
        %v743 = vpack.c.bf16 %v737, %v737
        %v744 = vpack.c.bf16 %v738, %v738
        %v745 = vpack.c.bf16 %v739, %v739
        %v746 = vpack.c.bf16 %v740, %v740
        %v747 = vld [vmem:[%s562] sm:$0xff]
        %v748 = vld [vmem:[%s562 + $0x8] sm:$0xf]
        %v749 = vld [vmem:[%s562 + $0xc] sm:$0xff]
        %v750 = vld [vmem:[%s562 + $0x14] sm:$0xf]
        %v751 = vld [vmem:[%s562 + $0x18] sm:$0xff]
        %v752 = vld [vmem:[%s562 + $0x20] sm:$0xf]
        %v753 = vld [vmem:[%s562 + $0x24] sm:$0xff]
        %v754 = vld [vmem:[%s562 + $0x2c] sm:$0xf]
        %v755 = vld [vmem:[%s562 + $0x30] sm:$0xff]
        %v756 = vld [vmem:[%s562 + $0x38] sm:$0xf]
        %v757 = vld [vmem:[%s562 + $0x3c] sm:$0xff]
        %v758 = vld [vmem:[%s562 + $0x44] sm:$0xf]
        %v759 = vld [vmem:[%s562 + $0x48] sm:$0xff]
        %v760 = vld [vmem:[%s562 + $0x50] sm:$0xf]
        %v761 = vld [vmem:[%s562 + $0x54] sm:$0xff]
        %v762 = vld [vmem:[%s562 + $0x5c] sm:$0xf]
        %v763 = vld [vmem:[%s562 + $0x60] sm:$0xff]
        %v764 = vld [vmem:[%s562 + $0x68] sm:$0xf]
        %v765 = vld [vmem:[%s562 + $0x6c] sm:$0xff]
        %v766 = vld [vmem:[%s562 + $0x74] sm:$0xf]
        %v767 = vld [vmem:[%s562 + $0x78] sm:$0xff]
        %v768 = vld [vmem:[%s562 + $0x80] sm:$0xf]
        %v769 = vld [vmem:[%s562 + $0x84] sm:$0xff]
        %v770 = vld [vmem:[%s562 + $0x8c] sm:$0xf]
        %v771 = vld [vmem:[%s562 + $0x90] sm:$0xff]
        %v772 = vld [vmem:[%s562 + $0x98] sm:$0xf]
        %v773 = vld [vmem:[%s562 + $0x9c] sm:$0xff]
        %v774 = vld [vmem:[%s562 + $0xa4] sm:$0xf]
        %v775 = vld [vmem:[%s562 + $0xa8] sm:$0xff]
        %v776 = vld [vmem:[%s562 + $0xb0] sm:$0xf]
        %v777 = vld [vmem:[%s562 + $0xb4] sm:$0xff]
        %v778 = vld [vmem:[%s562 + $0xbc] sm:$0xf]
        %v781 = vunpack.c.l.b16 %v743
        %v782 = vunpack.c.l.b16 %v744
        %v783 = vpack.c.b16 %v782, %v781
        %v817 = vunpack.c.l.b16 %v747
        %v818 = vunpack.c.h.b16 %v747
        %v819 = vunpack.c.l.b16 %v748
        %v820 = vunpack.c.l.b16 %v749
        %v821 = vunpack.c.h.b16 %v749
        %v822 = vunpack.c.l.b16 %v750
        %v823 = vunpack.c.l.b16 %v751
        %v824 = vunpack.c.h.b16 %v751
        %v825 = vunpack.c.l.b16 %v752
        %v826 = vunpack.c.l.b16 %v753
        %v827 = vunpack.c.h.b16 %v753
        %v828 = vunpack.c.l.b16 %v754
        %v829 = vunpack.c.l.b16 %v755
        %v830 = vunpack.c.h.b16 %v755
        %v831 = vunpack.c.l.b16 %v756
        %v832 = vunpack.c.l.b16 %v757
        %v833 = vunpack.c.h.b16 %v757
        %v834 = vunpack.c.l.b16 %v758
        %v835 = vunpack.c.l.b16 %v759
        %v836 = vunpack.c.h.b16 %v759
        %v837 = vunpack.c.l.b16 %v760
        %v838 = vunpack.c.l.b16 %v761
        %v839 = vunpack.c.h.b16 %v761
        %v840 = vunpack.c.l.b16 %v762
        %v841 = vunpack.c.l.b16 %v763
        %v842 = vunpack.c.h.b16 %v763
        %v843 = vunpack.c.l.b16 %v764
        %v844 = vunpack.c.l.b16 %v765
        %v845 = vunpack.c.h.b16 %v765
        %v846 = vunpack.c.l.b16 %v766
        %v847 = vunpack.c.l.b16 %v767
        %v848 = vunpack.c.h.b16 %v767
        %v849 = vunpack.c.l.b16 %v768
        %v850 = vunpack.c.l.b16 %v769
        %v851 = vunpack.c.h.b16 %v769
        %v852 = vunpack.c.l.b16 %v770
        %v853 = vunpack.c.l.b16 %v771
        %v854 = vunpack.c.h.b16 %v771
        %v855 = vunpack.c.l.b16 %v772
        %v856 = vunpack.c.l.b16 %v773
        %v857 = vunpack.c.h.b16 %v773
        %v858 = vunpack.c.l.b16 %v774
        %v859 = vunpack.c.l.b16 %v775
        %v860 = vunpack.c.h.b16 %v775
        %v861 = vunpack.c.l.b16 %v776
        %v862 = vunpack.c.l.b16 %v777
        %v863 = vunpack.c.h.b16 %v777
        %v864 = vunpack.c.l.b16 %v778
        %v865 = vpack.c.b16 %v820, %v817
        %v866 = vpack.c.b16 %v821, %v818
        %v867 = vpack.c.b16 %v822, %v819
        %v868 = vpack.c.b16 %v826, %v823
        %v869 = vpack.c.b16 %v827, %v824
        %v870 = vpack.c.b16 %v828, %v825
        %v871 = vpack.c.b16 %v832, %v829
        %v872 = vpack.c.b16 %v833, %v830
        %v873 = vpack.c.b16 %v834, %v831
        %v874 = vpack.c.b16 %v838, %v835
        %v875 = vpack.c.b16 %v839, %v836
        %v876 = vpack.c.b16 %v840, %v837
        %v877 = vpack.c.b16 %v844, %v841
        %v878 = vpack.c.b16 %v845, %v842
        %v879 = vpack.c.b16 %v846, %v843
        %v880 = vpack.c.b16 %v850, %v847
        %v881 = vpack.c.b16 %v851, %v848
        %v882 = vpack.c.b16 %v852, %v849
        %v883 = vpack.c.b16 %v856, %v853
        %v884 = vpack.c.b16 %v857, %v854
        %v885 = vpack.c.b16 %v858, %v855
        %v886 = vpack.c.b16 %v862, %v859
        %v887 = vpack.c.b16 %v863, %v860
        %v888 = vpack.c.b16 %v864, %v861
        %913 = vmatprep.subr.bf16.mxu0 %v866
        %914 = vmatpush1.bf16.msra.mxu0 %v865
        %915 = vmatprep.subr.bf16.mxu0 %v869
        %916 = vmatpush1.bf16.msra.mxu0 %v868
        %917 = vmatprep.subr.bf16.mxu0 %v872
        %918 = vmatpush1.bf16.msra.mxu0 %v871
        %919 = vmatprep.subr.bf16.mxu0 %v875
        %920 = vmatpush1.bf16.msra.mxu0 %v874
        %921 = vmatprep.subr.bf16.mxu0 %v878
        %922 = vmatpush1.bf16.msra.mxu0 %v877
        %923 = vmatprep.subr.bf16.mxu0 %v881
        %924 = vmatpush1.bf16.msra.mxu0 %v880
        %925 = vmatprep.subr.bf16.mxu0 %v884
        %926 = vmatpush1.bf16.msra.mxu0 %v883
        %927 = vmatprep.subr.bf16.mxu0 %v887
        %928 = vmatpush1.bf16.msra.mxu0 %v886
        %929 = vmatprep.subr.bf16.mxu0 0
        %930 = vmatpush1.bf16.msra.mxu0 0
        %931 = vmatprep.subr.bf16.mxu0 0
        %932 = vmatpush1.bf16.msra.mxu0 0
        %933 = vmatprep.subr.bf16.mxu0 0
        %934 = vmatpush1.bf16.msra.mxu0 0
        %935 = vmatprep.subr.bf16.mxu0 0
        %936 = vmatpush1.bf16.msra.mxu0 0
        %937 = vmatprep.subr.bf16.mxu0 0
        %938 = vmatpush1.bf16.msra.mxu0 0
        %939 = vmatprep.subr.bf16.mxu0 0
        %940 = vmatpush1.bf16.msra.mxu0 0
        %941 = vmatprep.subr.bf16.mxu0 0
        %942 = vmatpush1.bf16.msra.mxu0 0
        %943 = vmatprep.subr.bf16.mxu0 0
        %944 = vmatpush1.bf16.msra.mxu0 0
        %945 = vmatprep.mubr.bf16.mxu0 0
        %946 = vmatmul.mubr.bf16.gmra.mrb[0].mxu0 %v783
        %v947 = vpop.f32.mrb[0].mxu0
        %v948 = vadd.f32 0.0, %v947
        %v949 = vpop.f32.mrb[0].mxu0
        %v950 = vadd.f32 0.0, %v949
        %v951 = vpop.f32.mrb[0].mxu0
        %v952 = vadd.f32 0.0, %v951
        %v953 = vpop.f32.mrb[0].mxu0
        %v954 = vadd.f32 0.0, %v953
        %955 = vdwg.mxu0
        %956 = vmatprep.subr.bf16.mxu0 0
        %957 = vmatpush1.bf16.msra.mxu0 %v867
        %958 = vmatprep.subr.bf16.mxu0 0
        %959 = vmatpush1.bf16.msra.mxu0 %v870
        %960 = vmatprep.subr.bf16.mxu0 0
        %961 = vmatpush1.bf16.msra.mxu0 %v873
        %962 = vmatprep.subr.bf16.mxu0 0
        %963 = vmatpush1.bf16.msra.mxu0 %v876
        %964 = vmatprep.subr.bf16.mxu0 0
        %965 = vmatpush1.bf16.msra.mxu0 %v879
        %966 = vmatprep.subr.bf16.mxu0 0
        %967 = vmatpush1.bf16.msra.mxu0 %v882
        %968 = vmatprep.subr.bf16.mxu0 0
        %969 = vmatpush1.bf16.msra.mxu0 %v885
        %970 = vmatprep.subr.bf16.mxu0 0
        %971 = vmatpush1.bf16.msra.mxu0 %v888
        %972 = vmatprep.subr.bf16.mxu0 0
        %973 = vmatpush1.bf16.msra.mxu0 0
        %974 = vmatprep.subr.bf16.mxu0 0
        %975 = vmatpush1.bf16.msra.mxu0 0
        %976 = vmatprep.subr.bf16.mxu0 0
        %977 = vmatpush1.bf16.msra.mxu0 0
        %978 = vmatprep.subr.bf16.mxu0 0
        %979 = vmatpush1.bf16.msra.mxu0 0
        %980 = vmatprep.subr.bf16.mxu0 0
        %981 = vmatpush1.bf16.msra.mxu0 0
        %982 = vmatprep.subr.bf16.mxu0 0
        %983 = vmatpush1.bf16.msra.mxu0 0
        %984 = vmatprep.subr.bf16.mxu0 0
        %985 = vmatpush1.bf16.msra.mxu0 0
        %986 = vmatprep.subr.bf16.mxu0 0
        %987 = vmatpush1.bf16.msra.mxu0 0
        %988 = vmatprep.mubr.bf16.mxu0 0
        %989 = vmatmul.mubr.bf16.gmra.mrb[0].mxu0 %v783
        %v990 = vpop.f32.mrb[0].mxu0
        %v991 = vadd.f32 0.0, %v990
        %v992 = vpop.f32.mrb[0].mxu0
        %v993 = vpop.f32.mrb[0].mxu0
        %v994 = vadd.f32 0.0, %v993
        %v995 = vpop.f32.mrb[0].mxu0
        %996 = vdwg.mxu0
        %v997 = vld [vmem:[%s571] sm:$0xff]
        %v998 = vld [vmem:[%s571 + $0x8] sm:$0xf]
        %v999 = vld [vmem:[%s571 + $0xc] sm:$0xff]
        %v1000 = vld [vmem:[%s571 + $0x14] sm:$0xf]
        %v1001 = vld [vmem:[%s571 + $0x18] sm:$0xff]
        %v1002 = vld [vmem:[%s571 + $0x20] sm:$0xf]
        %v1003 = vld [vmem:[%s571 + $0x24] sm:$0xff]
        %v1004 = vld [vmem:[%s571 + $0x2c] sm:$0xf]
        %v1005 = vld [vmem:[%s571 + $0x30] sm:$0xff]
        %v1006 = vld [vmem:[%s571 + $0x38] sm:$0xf]
        %v1007 = vld [vmem:[%s571 + $0x3c] sm:$0xff]
        %v1008 = vld [vmem:[%s571 + $0x44] sm:$0xf]
        %v1009 = vld [vmem:[%s571 + $0x48] sm:$0xff]
        %v1010 = vld [vmem:[%s571 + $0x50] sm:$0xf]
        %v1011 = vld [vmem:[%s571 + $0x54] sm:$0xff]
        %v1012 = vld [vmem:[%s571 + $0x5c] sm:$0xf]
        %v1013 = vld [vmem:[%s571 + $0x60] sm:$0xff]
        %v1014 = vld [vmem:[%s571 + $0x68] sm:$0xf]
        %v1015 = vld [vmem:[%s571 + $0x6c] sm:$0xff]
        %v1016 = vld [vmem:[%s571 + $0x74] sm:$0xf]
        %v1017 = vld [vmem:[%s571 + $0x78] sm:$0xff]
        %v1018 = vld [vmem:[%s571 + $0x80] sm:$0xf]
        %v1019 = vld [vmem:[%s571 + $0x84] sm:$0xff]
        %v1020 = vld [vmem:[%s571 + $0x8c] sm:$0xf]
        %v1021 = vld [vmem:[%s571 + $0x90] sm:$0xff]
        %v1022 = vld [vmem:[%s571 + $0x98] sm:$0xf]
        %v1023 = vld [vmem:[%s571 + $0x9c] sm:$0xff]
        %v1024 = vld [vmem:[%s571 + $0xa4] sm:$0xf]
        %v1025 = vld [vmem:[%s571 + $0xa8] sm:$0xff]
        %v1026 = vld [vmem:[%s571 + $0xb0] sm:$0xf]
        %v1027 = vld [vmem:[%s571 + $0xb4] sm:$0xff]
        %v1028 = vld [vmem:[%s571 + $0xbc] sm:$0xf]
        %v1031 = vunpack.c.l.b16 %v745
        %v1032 = vunpack.c.l.b16 %v746
        %v1033 = vpack.c.b16 %v1032, %v1031
        %v1067 = vunpack.c.l.b16 %v997
        %v1068 = vunpack.c.h.b16 %v997
        %v1069 = vunpack.c.l.b16 %v998
        %v1070 = vunpack.c.l.b16 %v999
        %v1071 = vunpack.c.h.b16 %v999
        %v1072 = vunpack.c.l.b16 %v1000
        %v1073 = vunpack.c.l.b16 %v1001
        %v1074 = vunpack.c.h.b16 %v1001
        %v1075 = vunpack.c.l.b16 %v1002
        %v1076 = vunpack.c.l.b16 %v1003
        %v1077 = vunpack.c.h.b16 %v1003
        %v1078 = vunpack.c.l.b16 %v1004
        %v1079 = vunpack.c.l.b16 %v1005
        %v1080 = vunpack.c.h.b16 %v1005
        %v1081 = vunpack.c.l.b16 %v1006
        %v1082 = vunpack.c.l.b16 %v1007
        %v1083 = vunpack.c.h.b16 %v1007
        %v1084 = vunpack.c.l.b16 %v1008
        %v1085 = vunpack.c.l.b16 %v1009
        %v1086 = vunpack.c.h.b16 %v1009
        %v1087 = vunpack.c.l.b16 %v1010
        %v1088 = vunpack.c.l.b16 %v1011
        %v1089 = vunpack.c.h.b16 %v1011
        %v1090 = vunpack.c.l.b16 %v1012
        %v1091 = vunpack.c.l.b16 %v1013
        %v1092 = vunpack.c.h.b16 %v1013
        %v1093 = vunpack.c.l.b16 %v1014
        %v1094 = vunpack.c.l.b16 %v1015
        %v1095 = vunpack.c.h.b16 %v1015
        %v1096 = vunpack.c.l.b16 %v1016
        %v1097 = vunpack.c.l.b16 %v1017
        %v1098 = vunpack.c.h.b16 %v1017
        %v1099 = vunpack.c.l.b16 %v1018
        %v1100 = vunpack.c.l.b16 %v1019
        %v1101 = vunpack.c.h.b16 %v1019
        %v1102 = vunpack.c.l.b16 %v1020
        %v1103 = vunpack.c.l.b16 %v1021
        %v1104 = vunpack.c.h.b16 %v1021
        %v1105 = vunpack.c.l.b16 %v1022
        %v1106 = vunpack.c.l.b16 %v1023
        %v1107 = vunpack.c.h.b16 %v1023
        %v1108 = vunpack.c.l.b16 %v1024
        %v1109 = vunpack.c.l.b16 %v1025
        %v1110 = vunpack.c.h.b16 %v1025
        %v1111 = vunpack.c.l.b16 %v1026
        %v1112 = vunpack.c.l.b16 %v1027
        %v1113 = vunpack.c.h.b16 %v1027
        %v1114 = vunpack.c.l.b16 %v1028
        %v1115 = vpack.c.b16 %v1070, %v1067
        %v1116 = vpack.c.b16 %v1071, %v1068
        %v1117 = vpack.c.b16 %v1072, %v1069
        %v1118 = vpack.c.b16 %v1076, %v1073
        %v1119 = vpack.c.b16 %v1077, %v1074
        %v1120 = vpack.c.b16 %v1078, %v1075
        %v1121 = vpack.c.b16 %v1082, %v1079
        %v1122 = vpack.c.b16 %v1083, %v1080
        %v1123 = vpack.c.b16 %v1084, %v1081
        %v1124 = vpack.c.b16 %v1088, %v1085
        %v1125 = vpack.c.b16 %v1089, %v1086
        %v1126 = vpack.c.b16 %v1090, %v1087
        %v1127 = vpack.c.b16 %v1094, %v1091
        %v1128 = vpack.c.b16 %v1095, %v1092
        %v1129 = vpack.c.b16 %v1096, %v1093
        %v1130 = vpack.c.b16 %v1100, %v1097
        %v1131 = vpack.c.b16 %v1101, %v1098
        %v1132 = vpack.c.b16 %v1102, %v1099
        %v1133 = vpack.c.b16 %v1106, %v1103
        %v1134 = vpack.c.b16 %v1107, %v1104
        %v1135 = vpack.c.b16 %v1108, %v1105
        %v1136 = vpack.c.b16 %v1112, %v1109
        %v1137 = vpack.c.b16 %v1113, %v1110
        %v1138 = vpack.c.b16 %v1114, %v1111
        %1163 = vmatprep.subr.bf16.mxu0 %v1116
        %1164 = vmatpush1.bf16.msra.mxu0 %v1115
        %1165 = vmatprep.subr.bf16.mxu0 %v1119
        %1166 = vmatpush1.bf16.msra.mxu0 %v1118
        %1167 = vmatprep.subr.bf16.mxu0 %v1122
        %1168 = vmatpush1.bf16.msra.mxu0 %v1121
        %1169 = vmatprep.subr.bf16.mxu0 %v1125
        %1170 = vmatpush1.bf16.msra.mxu0 %v1124
        %1171 = vmatprep.subr.bf16.mxu0 %v1128
        %1172 = vmatpush1.bf16.msra.mxu0 %v1127
        %1173 = vmatprep.subr.bf16.mxu0 %v1131
        %1174 = vmatpush1.bf16.msra.mxu0 %v1130
        %1175 = vmatprep.subr.bf16.mxu0 %v1134
        %1176 = vmatpush1.bf16.msra.mxu0 %v1133
        %1177 = vmatprep.subr.bf16.mxu0 %v1137
        %1178 = vmatpush1.bf16.msra.mxu0 %v1136
        %1179 = vmatprep.subr.bf16.mxu0 0
        %1180 = vmatpush1.bf16.msra.mxu0 0
        %1181 = vmatprep.subr.bf16.mxu0 0
        %1182 = vmatpush1.bf16.msra.mxu0 0
        %1183 = vmatprep.subr.bf16.mxu0 0
        %1184 = vmatpush1.bf16.msra.mxu0 0
        %1185 = vmatprep.subr.bf16.mxu0 0
        %1186 = vmatpush1.bf16.msra.mxu0 0
        %1187 = vmatprep.subr.bf16.mxu0 0
        %1188 = vmatpush1.bf16.msra.mxu0 0
        %1189 = vmatprep.subr.bf16.mxu0 0
        %1190 = vmatpush1.bf16.msra.mxu0 0
        %1191 = vmatprep.subr.bf16.mxu0 0
        %1192 = vmatpush1.bf16.msra.mxu0 0
        %1193 = vmatprep.subr.bf16.mxu0 0
        %1194 = vmatpush1.bf16.msra.mxu0 0
        %1195 = vmatprep.mubr.bf16.mxu0 0
        %1196 = vmatmul.mubr.bf16.gmra.mrb[0].mxu0 %v1033
        %v1197 = vpop.f32.mrb[0].mxu0
        %v1198 = vadd.f32 0.0, %v1197
        %v1199 = vpop.f32.mrb[0].mxu0
        %v1200 = vadd.f32 0.0, %v1199
        %v1201 = vpop.f32.mrb[0].mxu0
        %v1202 = vadd.f32 0.0, %v1201
        %v1203 = vpop.f32.mrb[0].mxu0
        %v1204 = vadd.f32 0.0, %v1203
        %1205 = vdwg.mxu0
        %1206 = vmatprep.subr.bf16.mxu0 0
        %1207 = vmatpush1.bf16.msra.mxu0 %v1117
        %1208 = vmatprep.subr.bf16.mxu0 0
        %1209 = vmatpush1.bf16.msra.mxu0 %v1120
        %1210 = vmatprep.subr.bf16.mxu0 0
        %1211 = vmatpush1.bf16.msra.mxu0 %v1123
        %1212 = vmatprep.subr.bf16.mxu0 0
        %1213 = vmatpush1.bf16.msra.mxu0 %v1126
        %1214 = vmatprep.subr.bf16.mxu0 0
        %1215 = vmatpush1.bf16.msra.mxu0 %v1129
        %1216 = vmatprep.subr.bf16.mxu0 0
        %1217 = vmatpush1.bf16.msra.mxu0 %v1132
        %1218 = vmatprep.subr.bf16.mxu0 0
        %1219 = vmatpush1.bf16.msra.mxu0 %v1135
        %1220 = vmatprep.subr.bf16.mxu0 0
        %1221 = vmatpush1.bf16.msra.mxu0 %v1138
        %1222 = vmatprep.subr.bf16.mxu0 0
        %1223 = vmatpush1.bf16.msra.mxu0 0
        %1224 = vmatprep.subr.bf16.mxu0 0
        %1225 = vmatpush1.bf16.msra.mxu0 0
        %1226 = vmatprep.subr.bf16.mxu0 0
        %1227 = vmatpush1.bf16.msra.mxu0 0
        %1228 = vmatprep.subr.bf16.mxu0 0
        %1229 = vmatpush1.bf16.msra.mxu0 0
        %1230 = vmatprep.subr.bf16.mxu0 0
        %1231 = vmatpush1.bf16.msra.mxu0 0
        %1232 = vmatprep.subr.bf16.mxu0 0
        %1233 = vmatpush1.bf16.msra.mxu0 0
        %1234 = vmatprep.subr.bf16.mxu0 0
        %1235 = vmatpush1.bf16.msra.mxu0 0
        %1236 = vmatprep.subr.bf16.mxu0 0
        %1237 = vmatpush1.bf16.msra.mxu0 0
        %1238 = vmatprep.mubr.bf16.mxu0 0
        %1239 = vmatmul.mubr.bf16.gmra.mrb[0].mxu0 %v1033
        %v1240 = vpop.f32.mrb[0].mxu0
        %v1241 = vadd.f32 0.0, %v1240
        %v1242 = vpop.f32.mrb[0].mxu0
        %v1243 = vpop.f32.mrb[0].mxu0
        %v1244 = vadd.f32 0.0, %v1243
        %v1245 = vpop.f32.mrb[0].mxu0
        %1246 = vdwg.mxu0
        %v1247 = vld [vmem:[%s580] sm:$0xf]
        %v1248 = vld [vmem:[%s580 + $0x4] sm:$0xf]
        %v1249 = vld [vmem:[%s580 + $0x8] sm:$0xf]
        %v1250 = vld [vmem:[%s580 + $0xc] sm:$0xf]
        %v1251 = vld [vmem:[%s580 + $0x10] sm:$0xf]
        %v1252 = vld [vmem:[%s580 + $0x14] sm:$0xf]
        %v1253 = vld [vmem:[%s580 + $0x18] sm:$0xf]
        %v1254 = vld [vmem:[%s580 + $0x1c] sm:$0xf]
        %v1255 = vld [vmem:[%s580 + $0x20] sm:$0xf]
        %v1256 = vld [vmem:[%s580 + $0x24] sm:$0xf]
        %v1257 = vld [vmem:[%s580 + $0x28] sm:$0xf]
        %v1258 = vld [vmem:[%s580 + $0x2c] sm:$0xf]
        %v1259 = vld [vmem:[%s580 + $0x30] sm:$0xf]
        %v1260 = vld [vmem:[%s580 + $0x34] sm:$0xf]
        %v1261 = vld [vmem:[%s580 + $0x38] sm:$0xf]
        %v1262 = vld [vmem:[%s580 + $0x3c] sm:$0xf]
        %v1263 = vpack.c.bf16 %v948, %v948
        %v1264 = vpack.c.bf16 %v952, %v952
        %v1265 = vpack.c.bf16 %v1198, %v1198
        %v1266 = vpack.c.bf16 %v1202, %v1202
        %v1269 = vunpack.c.l.s4 1966171168
        %v1270 = vunpack.c.0.s8 %v1269
        %v1271 = vlaneseq
        %v1272 = vshrl.u32 %v1271, 7
        %v1273 = vsub.s32 %v1270, %v1272
        %v1274 = vrot.slane %v742, %v1273
        %v1275 = vcombine.high %v1274, %v1274
        %v1277 = vunpack.c.l.s4 1966171168
        %v1278 = vunpack.c.0.s8 %v1277
        %v1279 = vlaneseq
        %v1280 = vshrl.u32 %v1279, 7
        %v1281 = vsub.s32 %v1278, %v1280
        %v1282 = vrot.slane %v1274, %v1281
        %v1284 = vunpack.c.l.s4 1966171168
        %v1285 = vunpack.c.0.s8 %v1284
        %v1286 = vlaneseq
        %v1287 = vshrl.u32 %v1286, 7
        %v1288 = vsub.s32 %v1285, %v1287
        %v1289 = vrot.slane %v1275, %v1288
        %v1290 = vlaneseq
        %v1291 = vshrl.u32 %v1290, 7
        %v1292 = vsub.s32 0, %v1291
        %v1293 = vrot.slane %v1282, %v1292
        %v1294 = vlaneseq
        %v1295 = vshrl.u32 %v1294, 7
        %v1296 = vsub.s32 0, %v1295
        %v1297 = vrot.slane %v1289, %v1296
        %1300 = vmatprep.subr.bf16.mxu0 0
        %1301 = vmatpush1.bf16.xpose.msra.mxu0 %v1265
        %1302 = vmatprep.subr.bf16.mxu0 0
        %1303 = vmatpush1.bf16.xpose.msra.mxu0 0
        %1304 = vmatprep.subr.bf16.mxu0 0
        %1305 = vmatpush1.bf16.xpose.msra.mxu0 0
        %1306 = vmatprep.subr.bf16.mxu0 0
        %1307 = vmatpush1.bf16.xpose.msra.mxu0 0
        %1308 = vmatprep.subr.bf16.mxu0 0
        %1309 = vmatpush1.bf16.xpose.msra.mxu0 0
        %1310 = vmatprep.subr.bf16.mxu0 0
        %1311 = vmatpush1.bf16.xpose.msra.mxu0 0
        %1312 = vmatprep.subr.bf16.mxu0 0
        %1313 = vmatpush1.bf16.xpose.msra.mxu0 0
        %1314 = vmatprep.subr.bf16.mxu0 0
        %1315 = vmatpush1.bf16.xpose.msra.mxu0 0
        %1316 = vmatprep.subr.bf16.mxu0 0
        %1317 = vmatpush1.bf16.xpose.msra.mxu0 0
        %1318 = vmatprep.subr.bf16.mxu0 0
        %1319 = vmatpush1.bf16.xpose.msra.mxu0 0
        %1320 = vmatprep.subr.bf16.mxu0 0
        %1321 = vmatpush1.bf16.xpose.msra.mxu0 0
        %1322 = vmatprep.subr.bf16.mxu0 0
        %1323 = vmatpush1.bf16.xpose.msra.mxu0 0
        %1324 = vmatprep.subr.bf16.mxu0 0
        %1325 = vmatpush1.bf16.xpose.msra.mxu0 0
        %1326 = vmatprep.subr.bf16.mxu0 0
        %1327 = vmatpush1.bf16.xpose.msra.mxu0 0
        %1328 = vmatprep.subr.bf16.mxu0 0
        %1329 = vmatpush1.bf16.xpose.msra.mxu0 0
        %1330 = vmatprep.subr.bf16.mxu0 0
        %1331 = vmatpush1.bf16.xpose.msra.mxu0 0
        %1332 = vmatprep.mubr.bf16.mxu0 0
        %1333 = vmatmul.mubr.bf16.gmra.mrb[0].mxu0 %v1263
        %v1334 = vpop.f32.mrb[0].mxu0
        %v1335 = vadd.f32 %v1293, %v1334
        %v1336 = vpop.f32.mrb[0].mxu0
        %v1337 = vpop.f32.mrb[0].mxu0
        %v1338 = vpop.f32.mrb[0].mxu0
        %1339 = vdwg.mxu0
        %1340 = vmatprep.subr.bf16.mxu0 0
        %1341 = vmatpush1.bf16.xpose.msra.mxu0 %v1266
        %1342 = vmatprep.subr.bf16.mxu0 0
        %1343 = vmatpush1.bf16.xpose.msra.mxu0 0
        %1344 = vmatprep.subr.bf16.mxu0 0
        %1345 = vmatpush1.bf16.xpose.msra.mxu0 0
        %1346 = vmatprep.subr.bf16.mxu0 0
        %1347 = vmatpush1.bf16.xpose.msra.mxu0 0
        %1348 = vmatprep.subr.bf16.mxu0 0
        %1349 = vmatpush1.bf16.xpose.msra.mxu0 0
        %1350 = vmatprep.subr.bf16.mxu0 0
        %1351 = vmatpush1.bf16.xpose.msra.mxu0 0
        %1352 = vmatprep.subr.bf16.mxu0 0
        %1353 = vmatpush1.bf16.xpose.msra.mxu0 0
        %1354 = vmatprep.subr.bf16.mxu0 0
        %1355 = vmatpush1.bf16.xpose.msra.mxu0 0
        %1356 = vmatprep.subr.bf16.mxu0 0
        %1357 = vmatpush1.bf16.xpose.msra.mxu0 0
        %1358 = vmatprep.subr.bf16.mxu0 0
        %1359 = vmatpush1.bf16.xpose.msra.mxu0 0
        %1360 = vmatprep.subr.bf16.mxu0 0
        %1361 = vmatpush1.bf16.xpose.msra.mxu0 0
        %1362 = vmatprep.subr.bf16.mxu0 0
        %1363 = vmatpush1.bf16.xpose.msra.mxu0 0
        %1364 = vmatprep.subr.bf16.mxu0 0
        %1365 = vmatpush1.bf16.xpose.msra.mxu0 0
        %1366 = vmatprep.subr.bf16.mxu0 0
        %1367 = vmatpush1.bf16.xpose.msra.mxu0 0
        %1368 = vmatprep.subr.bf16.mxu0 0
        %1369 = vmatpush1.bf16.xpose.msra.mxu0 0
        %1370 = vmatprep.subr.bf16.mxu0 0
        %1371 = vmatpush1.bf16.xpose.msra.mxu0 0
        %1372 = vmatprep.mubr.bf16.mxu0 0
        %1373 = vmatmul.mubr.bf16.gmra.mrb[0].mxu0 %v1264
        %v1374 = vpop.f32.mrb[0].mxu0
        %v1375 = vadd.f32 %v1297, %v1374
        %v1376 = vpop.f32.mrb[0].mxu0
        %v1377 = vpop.f32.mrb[0].mxu0
        %v1378 = vpop.f32.mrb[0].mxu0
        %1379 = vdwg.mxu0
        %vm1380 = vcmask 64512
        %v1381 = vsel %vm1380, %v1335, -inf
        %1382 = vmax.xlane.f32.xlu0 %v1381
        %v1383 = vpop.xlane.xlu0 %1382
        %v1384 = vsel %vm1380, %v1375, -inf
        %1385 = vmax.xlane.f32.xlu0 %v1384
        %v1386 = vpop.xlane.xlu0 %1385
        %v1387 = vsub.f32 %v1335, %v1383
        %v1388 = vsub.f32 %v1375, %v1386
        %v1389 = vmul.f32 %v1387, 1.442695
        %v1390 = vpow.pop %v1389
        %v1391 = vmul.f32 %v1388, 1.442695
        %v1392 = vpow.pop %v1391
        %v1393 = vsel %vm1380, %v1390, 0.0
        %1394 = vadd.xlane.f32.xlu0 %v1393
        %v1395 = vpop.xlane.xlu0 %1394
        %v1396 = vsel %vm1380, %v1392, 0.0
        %1397 = vadd.xlane.f32.xlu0 %v1396
        %v1398 = vpop.xlane.xlu0 %1397
        %v1399 = vrcp.pop %v1395
        %v1400 = vrcp.pop %v1398
        %v1401 = vmul.f32 %v1390, %v1399
        %v1402 = vmul.f32 %v1392, %v1400
        %v1403 = vpack.c.bf16 %v1401, %v1401
        %v1404 = vpack.c.bf16 %v1402, %v1402
        %v1405 = vpack.c.bf16 %v1200, %v1200
        %v1406 = vpack.c.bf16 %v1204, %v1204
        %v1408 = vsel %vm1380, %v1403, 0
        %vm1410 = vcmask 1043456
        %v1412 = vsel %vm1410, %v1405, 0
        %1414 = vmatprep.subr.bf16.mxu0 0
        %1415 = vmatpush1.bf16.msra.mxu0 %v1412
        %1416 = vmatprep.subr.bf16.mxu0 0
        %1417 = vmatpush1.bf16.msra.mxu0 0
        %1418 = vmatprep.subr.bf16.mxu0 0
        %1419 = vmatpush1.bf16.msra.mxu0 0
        %1420 = vmatprep.subr.bf16.mxu0 0
        %1421 = vmatpush1.bf16.msra.mxu0 0
        %1422 = vmatprep.subr.bf16.mxu0 0
        %1423 = vmatpush1.bf16.msra.mxu0 0
        %1424 = vmatprep.subr.bf16.mxu0 0
        %1425 = vmatpush1.bf16.msra.mxu0 0
        %1426 = vmatprep.subr.bf16.mxu0 0
        %1427 = vmatpush1.bf16.msra.mxu0 0
        %1428 = vmatprep.subr.bf16.mxu0 0
        %1429 = vmatpush1.bf16.msra.mxu0 0
        %1430 = vmatprep.subr.bf16.mxu0 0
        %1431 = vmatpush1.bf16.msra.mxu0 0
        %1432 = vmatprep.subr.bf16.mxu0 0
        %1433 = vmatpush1.bf16.msra.mxu0 0
        %1434 = vmatprep.subr.bf16.mxu0 0
        %1435 = vmatpush1.bf16.msra.mxu0 0
        %1436 = vmatprep.subr.bf16.mxu0 0
        %1437 = vmatpush1.bf16.msra.mxu0 0
        %1438 = vmatprep.subr.bf16.mxu0 0
        %1439 = vmatpush1.bf16.msra.mxu0 0
        %1440 = vmatprep.subr.bf16.mxu0 0
        %1441 = vmatpush1.bf16.msra.mxu0 0
        %1442 = vmatprep.subr.bf16.mxu0 0
        %1443 = vmatpush1.bf16.msra.mxu0 0
        %1444 = vmatprep.subr.bf16.mxu0 0
        %1445 = vmatpush1.bf16.msra.mxu0 0
        %1446 = vmatprep.mubr.bf16.mxu0 0
        %1447 = vmatmul.mubr.bf16.gmra.mrb[0].mxu0 %v1408
        %v1448 = vpop.f32.mrb[0].mxu0
        %v1449 = vadd.f32 0.0, %v1448
        %v1450 = vpop.f32.mrb[0].mxu0
        %v1451 = vpop.f32.mrb[0].mxu0
        %v1452 = vpop.f32.mrb[0].mxu0
        %1453 = vdwg.mxu0
        %v1455 = vsel %vm1380, %v1404, 0
        %v1458 = vsel %vm1410, %v1406, 0
        %1460 = vmatprep.subr.bf16.mxu0 0
        %1461 = vmatpush1.bf16.msra.mxu0 %v1458
        %1462 = vmatprep.subr.bf16.mxu0 0
        %1463 = vmatpush1.bf16.msra.mxu0 0
        %1464 = vmatprep.subr.bf16.mxu0 0
        %1465 = vmatpush1.bf16.msra.mxu0 0
        %1466 = vmatprep.subr.bf16.mxu0 0
        %1467 = vmatpush1.bf16.msra.mxu0 0
        %1468 = vmatprep.subr.bf16.mxu0 0
        %1469 = vmatpush1.bf16.msra.mxu0 0
        %1470 = vmatprep.subr.bf16.mxu0 0
        %1471 = vmatpush1.bf16.msra.mxu0 0
        %1472 = vmatprep.subr.bf16.mxu0 0
        %1473 = vmatpush1.bf16.msra.mxu0 0
        %1474 = vmatprep.subr.bf16.mxu0 0
        %1475 = vmatpush1.bf16.msra.mxu0 0
        %1476 = vmatprep.subr.bf16.mxu0 0
        %1477 = vmatpush1.bf16.msra.mxu0 0
        %1478 = vmatprep.subr.bf16.mxu0 0
        %1479 = vmatpush1.bf16.msra.mxu0 0
        %1480 = vmatprep.subr.bf16.mxu0 0
        %1481 = vmatpush1.bf16.msra.mxu0 0
        %1482 = vmatprep.subr.bf16.mxu0 0
        %1483 = vmatpush1.bf16.msra.mxu0 0
        %1484 = vmatprep.subr.bf16.mxu0 0
        %1485 = vmatpush1.bf16.msra.mxu0 0
        %1486 = vmatprep.subr.bf16.mxu0 0
        %1487 = vmatpush1.bf16.msra.mxu0 0
        %1488 = vmatprep.subr.bf16.mxu0 0
        %1489 = vmatpush1.bf16.msra.mxu0 0
        %1490 = vmatprep.subr.bf16.mxu0 0
        %1491 = vmatpush1.bf16.msra.mxu0 0
        %1492 = vmatprep.mubr.bf16.mxu0 0
        %1493 = vmatmul.mubr.bf16.gmra.mrb[0].mxu0 %v1455
        %v1494 = vpop.f32.mrb[0].mxu0
        %v1495 = vadd.f32 0.0, %v1494
        %v1496 = vpop.f32.mrb[0].mxu0
        %v1497 = vpop.f32.mrb[0].mxu0
        %v1498 = vpop.f32.mrb[0].mxu0
        %1499 = vdwg.mxu0
        %v1500 = vpack.c.bf16 %v1495, %v1449
        %v1517 = vunpack.c.l.b16 %v1247
        %v1518 = vunpack.c.l.b16 %v1248
        %v1519 = vunpack.c.l.b16 %v1249
        %v1520 = vunpack.c.l.b16 %v1250
        %v1521 = vunpack.c.l.b16 %v1251
        %v1522 = vunpack.c.l.b16 %v1252
        %v1523 = vunpack.c.l.b16 %v1253
        %v1524 = vunpack.c.l.b16 %v1254
        %v1525 = vunpack.c.l.b16 %v1255
        %v1526 = vunpack.c.l.b16 %v1256
        %v1527 = vunpack.c.l.b16 %v1257
        %v1528 = vunpack.c.l.b16 %v1258
        %v1529 = vunpack.c.l.b16 %v1259
        %v1530 = vunpack.c.l.b16 %v1260
        %v1531 = vunpack.c.l.b16 %v1261
        %v1532 = vunpack.c.l.b16 %v1262
        %v1533 = vpack.c.b16 %v1518, %v1517
        %v1534 = vpack.c.b16 %v1520, %v1519
        %v1535 = vpack.c.b16 %v1522, %v1521
        %v1536 = vpack.c.b16 %v1524, %v1523
        %v1537 = vpack.c.b16 %v1526, %v1525
        %v1538 = vpack.c.b16 %v1528, %v1527
        %v1539 = vpack.c.b16 %v1530, %v1529
        %v1540 = vpack.c.b16 %v1532, %v1531
        %1549 = vmatprep.subr.bf16.mxu0 0
        %1550 = vmatpush1.bf16.msra.mxu0 %v1533
        %1551 = vmatprep.subr.bf16.mxu0 0
        %1552 = vmatpush1.bf16.msra.mxu0 %v1534
        %1553 = vmatprep.subr.bf16.mxu0 0
        %1554 = vmatpush1.bf16.msra.mxu0 %v1535
        %1555 = vmatprep.subr.bf16.mxu0 0
        %1556 = vmatpush1.bf16.msra.mxu0 %v1536
        %1557 = vmatprep.subr.bf16.mxu0 0
        %1558 = vmatpush1.bf16.msra.mxu0 %v1537
        %1559 = vmatprep.subr.bf16.mxu0 0
        %1560 = vmatpush1.bf16.msra.mxu0 %v1538
        %1561 = vmatprep.subr.bf16.mxu0 0
        %1562 = vmatpush1.bf16.msra.mxu0 %v1539
        %1563 = vmatprep.subr.bf16.mxu0 0
        %1564 = vmatpush1.bf16.msra.mxu0 %v1540
        %1565 = vmatprep.subr.bf16.mxu0 0
        %1566 = vmatpush1.bf16.msra.mxu0 0
        %1567 = vmatprep.subr.bf16.mxu0 0
        %1568 = vmatpush1.bf16.msra.mxu0 0
        %1569 = vmatprep.subr.bf16.mxu0 0
        %1570 = vmatpush1.bf16.msra.mxu0 0
        %1571 = vmatprep.subr.bf16.mxu0 0
        %1572 = vmatpush1.bf16.msra.mxu0 0
        %1573 = vmatprep.subr.bf16.mxu0 0
        %1574 = vmatpush1.bf16.msra.mxu0 0
        %1575 = vmatprep.subr.bf16.mxu0 0
        %1576 = vmatpush1.bf16.msra.mxu0 0
        %1577 = vmatprep.subr.bf16.mxu0 0
        %1578 = vmatpush1.bf16.msra.mxu0 0
        %1579 = vmatprep.subr.bf16.mxu0 0
        %1580 = vmatpush1.bf16.msra.mxu0 0
        %1581 = vmatprep.mubr.bf16.mxu0 0
        %1582 = vmatmul.mubr.bf16.gmra.mrb[0].mxu0 %v1500
        %v1583 = vpop.f32.mrb[0].mxu0
        %v1584 = vadd.f32 0.0, %v1583
        %v1585 = vpop.f32.mrb[0].mxu0
        %v1586 = vpop.f32.mrb[0].mxu0
        %v1587 = vadd.f32 0.0, %v1586
        %v1588 = vpop.f32.mrb[0].mxu0
        %1589 = vdwg.mxu0
        %v1590 = vadd.f32 %v737, %v1584
        %v1591 = vadd.f32 %v738, %v1587
        %v1592 = vld [vmem:[%s598] sm:$0xff]
        %v1593 = vld [vmem:[%s598 + $0x8] sm:$0xff]
        %v1594 = vld [vmem:[%s598 + $0x10] sm:$0xff]
        %v1595 = vld [vmem:[%s598 + $0x18] sm:$0xff]
        %v1596 = vld [vmem:[%s598 + $0x20] sm:$0xff]
        %v1597 = vld [vmem:[%s598 + $0x28] sm:$0xff]
        %v1598 = vld [vmem:[%s598 + $0x30] sm:$0xff]
        %v1599 = vld [vmem:[%s598 + $0x38] sm:$0xff]
        %v1600 = vld [vmem:[%s598 + $0x40] sm:$0xff]
        %v1601 = vld [vmem:[%s598 + $0x48] sm:$0xff]
        %v1602 = vld [vmem:[%s598 + $0x50] sm:$0xff]
        %v1603 = vld [vmem:[%s598 + $0x58] sm:$0xff]
        %v1604 = vld [vmem:[%s598 + $0x60] sm:$0xff]
        %v1605 = vld [vmem:[%s598 + $0x68] sm:$0xff]
        %v1606 = vld [vmem:[%s598 + $0x70] sm:$0xff]
        %v1607 = vld [vmem:[%s598 + $0x78] sm:$0xff]
        %v1608 = vld [vmem:[%s607] sm:$0xf]
        %v1609 = vld [vmem:[%s607 + $0x4] sm:$0xf]
        %v1610 = vld [vmem:[%s607 + $0x8] sm:$0xf]
        %v1611 = vld [vmem:[%s607 + $0xc] sm:$0xf]
        %v1612 = vld [vmem:[%s607 + $0x10] sm:$0xf]
        %v1613 = vld [vmem:[%s607 + $0x14] sm:$0xf]
        %v1614 = vld [vmem:[%s607 + $0x18] sm:$0xf]
        %v1615 = vld [vmem:[%s607 + $0x1c] sm:$0xf]
        %v1616 = vld [vmem:[%s607 + $0x20] sm:$0xf]
        %v1617 = vld [vmem:[%s607 + $0x24] sm:$0xf]
        %v1618 = vld [vmem:[%s607 + $0x28] sm:$0xf]
        %v1619 = vld [vmem:[%s607 + $0x2c] sm:$0xf]
        %v1620 = vld [vmem:[%s607 + $0x30] sm:$0xf]
        %v1621 = vld [vmem:[%s607 + $0x34] sm:$0xf]
        %v1622 = vld [vmem:[%s607 + $0x38] sm:$0xf]
        %v1623 = vld [vmem:[%s607 + $0x3c] sm:$0xf]
        %v1624 = vld [vmem:[%s607 + $0x40] sm:$0xf]
        %v1625 = vld [vmem:[%s607 + $0x44] sm:$0xf]
        %v1626 = vld [vmem:[%s607 + $0x48] sm:$0xf]
        %v1627 = vld [vmem:[%s607 + $0x4c] sm:$0xf]
        %v1628 = vld [vmem:[%s607 + $0x50] sm:$0xf]
        %v1629 = vld [vmem:[%s607 + $0x54] sm:$0xf]
        %v1630 = vld [vmem:[%s607 + $0x58] sm:$0xf]
        %v1631 = vld [vmem:[%s607 + $0x5c] sm:$0xf]
        %v1632 = vld [vmem:[%s607 + $0x60] sm:$0xf]
        %v1633 = vld [vmem:[%s607 + $0x64] sm:$0xf]
        %v1634 = vld [vmem:[%s607 + $0x68] sm:$0xf]
        %v1635 = vld [vmem:[%s607 + $0x6c] sm:$0xf]
        %v1636 = vld [vmem:[%s607 + $0x70] sm:$0xf]
        %v1637 = vld [vmem:[%s607 + $0x74] sm:$0xf]
        %v1638 = vld [vmem:[%s607 + $0x78] sm:$0xf]
        %v1639 = vld [vmem:[%s607 + $0x7c] sm:$0xf]
        %v1640 = vpack.c.bf16 %v1591, %v1590
        %v1657 = vunpack.c.l.b16 %v1592
        %v1658 = vunpack.c.h.b16 %v1592
        %v1659 = vunpack.c.l.b16 %v1593
        %v1660 = vunpack.c.h.b16 %v1593
        %v1661 = vunpack.c.l.b16 %v1594
        %v1662 = vunpack.c.h.b16 %v1594
        %v1663 = vunpack.c.l.b16 %v1595
        %v1664 = vunpack.c.h.b16 %v1595
        %v1665 = vunpack.c.l.b16 %v1596
        %v1666 = vunpack.c.h.b16 %v1596
        %v1667 = vunpack.c.l.b16 %v1597
        %v1668 = vunpack.c.h.b16 %v1597
        %v1669 = vunpack.c.l.b16 %v1598
        %v1670 = vunpack.c.h.b16 %v1598
        %v1671 = vunpack.c.l.b16 %v1599
        %v1672 = vunpack.c.h.b16 %v1599
        %v1673 = vunpack.c.l.b16 %v1600
        %v1674 = vunpack.c.h.b16 %v1600
        %v1675 = vunpack.c.l.b16 %v1601
        %v1676 = vunpack.c.h.b16 %v1601
        %v1677 = vunpack.c.l.b16 %v1602
        %v1678 = vunpack.c.h.b16 %v1602
        %v1679 = vunpack.c.l.b16 %v1603
        %v1680 = vunpack.c.h.b16 %v1603
        %v1681 = vunpack.c.l.b16 %v1604
        %v1682 = vunpack.c.h.b16 %v1604
        %v1683 = vunpack.c.l.b16 %v1605
        %v1684 = vunpack.c.h.b16 %v1605
        %v1685 = vunpack.c.l.b16 %v1606
        %v1686 = vunpack.c.h.b16 %v1606
        %v1687 = vunpack.c.l.b16 %v1607
        %v1688 = vunpack.c.h.b16 %v1607
        %v1689 = vpack.c.b16 %v1659, %v1657
        %v1690 = vpack.c.b16 %v1660, %v1658
        %v1691 = vpack.c.b16 %v1663, %v1661
        %v1692 = vpack.c.b16 %v1664, %v1662
        %v1693 = vpack.c.b16 %v1667, %v1665
        %v1694 = vpack.c.b16 %v1668, %v1666
        %v1695 = vpack.c.b16 %v1671, %v1669
        %v1696 = vpack.c.b16 %v1672, %v1670
        %v1697 = vpack.c.b16 %v1675, %v1673
        %v1698 = vpack.c.b16 %v1676, %v1674
        %v1699 = vpack.c.b16 %v1679, %v1677
        %v1700 = vpack.c.b16 %v1680, %v1678
        %v1701 = vpack.c.b16 %v1683, %v1681
        %v1702 = vpack.c.b16 %v1684, %v1682
        %v1703 = vpack.c.b16 %v1687, %v1685
        %v1704 = vpack.c.b16 %v1688, %v1686
        %1721 = vmatprep.subr.bf16.mxu0 %v1690
        %1722 = vmatpush1.bf16.msra.mxu0 %v1689
        %1723 = vmatprep.subr.bf16.mxu0 %v1692
        %1724 = vmatpush1.bf16.msra.mxu0 %v1691
        %1725 = vmatprep.subr.bf16.mxu0 %v1694
        %1726 = vmatpush1.bf16.msra.mxu0 %v1693
        %1727 = vmatprep.subr.bf16.mxu0 %v1696
        %1728 = vmatpush1.bf16.msra.mxu0 %v1695
        %1729 = vmatprep.subr.bf16.mxu0 %v1698
        %1730 = vmatpush1.bf16.msra.mxu0 %v1697
        %1731 = vmatprep.subr.bf16.mxu0 %v1700
        %1732 = vmatpush1.bf16.msra.mxu0 %v1699
        %1733 = vmatprep.subr.bf16.mxu0 %v1702
        %1734 = vmatpush1.bf16.msra.mxu0 %v1701
        %1735 = vmatprep.subr.bf16.mxu0 %v1704
        %1736 = vmatpush1.bf16.msra.mxu0 %v1703
        %1737 = vmatprep.subr.bf16.mxu0 0
        %1738 = vmatpush1.bf16.msra.mxu0 0
        %1739 = vmatprep.subr.bf16.mxu0 0
        %1740 = vmatpush1.bf16.msra.mxu0 0
        %1741 = vmatprep.subr.bf16.mxu0 0
        %1742 = vmatpush1.bf16.msra.mxu0 0
        %1743 = vmatprep.subr.bf16.mxu0 0
        %1744 = vmatpush1.bf16.msra.mxu0 0
        %1745 = vmatprep.subr.bf16.mxu0 0
        %1746 = vmatpush1.bf16.msra.mxu0 0
        %1747 = vmatprep.subr.bf16.mxu0 0
        %1748 = vmatpush1.bf16.msra.mxu0 0
        %1749 = vmatprep.subr.bf16.mxu0 0
        %1750 = vmatpush1.bf16.msra.mxu0 0
        %1751 = vmatprep.subr.bf16.mxu0 0
        %1752 = vmatpush1.bf16.msra.mxu0 0
        %1753 = vmatprep.mubr.bf16.mxu0 0
        %1754 = vmatmul.mubr.bf16.gmra.mrb[0].mxu0 %v1640
        %v1755 = vpop.f32.mrb[0].mxu0
        %v1756 = vadd.f32 0.0, %v1755
        %v1757 = vpop.f32.mrb[0].mxu0
        %v1758 = vadd.f32 0.0, %v1757
        %v1759 = vpop.f32.mrb[0].mxu0
        %v1760 = vadd.f32 0.0, %v1759
        %v1761 = vpop.f32.mrb[0].mxu0
        %v1762 = vadd.f32 0.0, %v1761
        %1763 = vdwg.mxu0
        %v1764 = vmax.f32 %v1756, 0.0
        %v1765 = vmax.f32 %v1758, 0.0
        %v1766 = vmax.f32 %v1760, 0.0
        %v1767 = vmax.f32 %v1762, 0.0
        %v1768 = vpack.c.bf16 %v1766, %v1764
        %v1769 = vpack.c.bf16 %v1767, %v1765
        %v1802 = vunpack.c.l.b16 %v1608
        %v1803 = vunpack.c.l.b16 %v1609
        %v1804 = vunpack.c.l.b16 %v1610
        %v1805 = vunpack.c.l.b16 %v1611
        %v1806 = vunpack.c.l.b16 %v1612
        %v1807 = vunpack.c.l.b16 %v1613
        %v1808 = vunpack.c.l.b16 %v1614
        %v1809 = vunpack.c.l.b16 %v1615
        %v1810 = vunpack.c.l.b16 %v1616
        %v1811 = vunpack.c.l.b16 %v1617
        %v1812 = vunpack.c.l.b16 %v1618
        %v1813 = vunpack.c.l.b16 %v1619
        %v1814 = vunpack.c.l.b16 %v1620
        %v1815 = vunpack.c.l.b16 %v1621
        %v1816 = vunpack.c.l.b16 %v1622
        %v1817 = vunpack.c.l.b16 %v1623
        %v1818 = vunpack.c.l.b16 %v1624
        %v1819 = vunpack.c.l.b16 %v1625
        %v1820 = vunpack.c.l.b16 %v1626
        %v1821 = vunpack.c.l.b16 %v1627
        %v1822 = vunpack.c.l.b16 %v1628
        %v1823 = vunpack.c.l.b16 %v1629
        %v1824 = vunpack.c.l.b16 %v1630
        %v1825 = vunpack.c.l.b16 %v1631
        %v1826 = vunpack.c.l.b16 %v1632
        %v1827 = vunpack.c.l.b16 %v1633
        %v1828 = vunpack.c.l.b16 %v1634
        %v1829 = vunpack.c.l.b16 %v1635
        %v1830 = vunpack.c.l.b16 %v1636
        %v1831 = vunpack.c.l.b16 %v1637
        %v1832 = vunpack.c.l.b16 %v1638
        %v1833 = vunpack.c.l.b16 %v1639
        %v1834 = vpack.c.b16 %v1803, %v1802
        %v1835 = vpack.c.b16 %v1805, %v1804
        %v1836 = vpack.c.b16 %v1807, %v1806
        %v1837 = vpack.c.b16 %v1809, %v1808
        %v1838 = vpack.c.b16 %v1811, %v1810
        %v1839 = vpack.c.b16 %v1813, %v1812
        %v1840 = vpack.c.b16 %v1815, %v1814
        %v1841 = vpack.c.b16 %v1817, %v1816
        %v1842 = vpack.c.b16 %v1819, %v1818
        %v1843 = vpack.c.b16 %v1821, %v1820
        %v1844 = vpack.c.b16 %v1823, %v1822
        %v1845 = vpack.c.b16 %v1825, %v1824
        %v1846 = vpack.c.b16 %v1827, %v1826
        %v1847 = vpack.c.b16 %v1829, %v1828
        %v1848 = vpack.c.b16 %v1831, %v1830
        %v1849 = vpack.c.b16 %v1833, %v1832
        %1866 = vmatprep.subr.bf16.mxu0 0
        %1867 = vmatpush1.bf16.msra.mxu0 %v1834
        %1868 = vmatprep.subr.bf16.mxu0 0
        %1869 = vmatpush1.bf16.msra.mxu0 %v1835
        %1870 = vmatprep.subr.bf16.mxu0 0
        %1871 = vmatpush1.bf16.msra.mxu0 %v1836
        %1872 = vmatprep.subr.bf16.mxu0 0
        %1873 = vmatpush1.bf16.msra.mxu0 %v1837
        %1874 = vmatprep.subr.bf16.mxu0 0
        %1875 = vmatpush1.bf16.msra.mxu0 %v1838
        %1876 = vmatprep.subr.bf16.mxu0 0
        %1877 = vmatpush1.bf16.msra.mxu0 %v1839
        %1878 = vmatprep.subr.bf16.mxu0 0
        %1879 = vmatpush1.bf16.msra.mxu0 %v1840
        %1880 = vmatprep.subr.bf16.mxu0 0
        %1881 = vmatpush1.bf16.msra.mxu0 %v1841
        %1882 = vmatprep.subr.bf16.mxu0 0
        %1883 = vmatpush1.bf16.msra.mxu0 %v1842
        %1884 = vmatprep.subr.bf16.mxu0 0
        %1885 = vmatpush1.bf16.msra.mxu0 %v1843
        %1886 = vmatprep.subr.bf16.mxu0 0
        %1887 = vmatpush1.bf16.msra.mxu0 %v1844
        %1888 = vmatprep.subr.bf16.mxu0 0
        %1889 = vmatpush1.bf16.msra.mxu0 %v1845
        %1890 = vmatprep.subr.bf16.mxu0 0
        %1891 = vmatpush1.bf16.msra.mxu0 %v1846
        %1892 = vmatprep.subr.bf16.mxu0 0
        %1893 = vmatpush1.bf16.msra.mxu0 %v1847
        %1894 = vmatprep.subr.bf16.mxu0 0
        %1895 = vmatpush1.bf16.msra.mxu0 %v1848
        %1896 = vmatprep.subr.bf16.mxu0 0
        %1897 = vmatpush1.bf16.msra.mxu0 %v1849
        %1898 = vmatprep.mubr.bf16.mxu0 %v1769
        %1899 = vmatmul.mubr.bf16.gmra.mrb[0].mxu0 %v1768
        %v1900 = vpop.f32.mrb[0].mxu0
        %v1901 = vadd.f32 0.0, %v1900
        %v1902 = vpop.f32.mrb[0].mxu0
        %v1903 = vpop.f32.mrb[0].mxu0
        %v1904 = vadd.f32 0.0, %v1903
        %v1905 = vpop.f32.mrb[0].mxu0
        %1906 = vdwg.mxu0
        %v1907 = vadd.f32 %v1590, %v1901
        %v1908 = vadd.f32 %v1591, %v1904
        %v1909 = vld [vmem:[%s589] sm:$0xf]
        %v1910 = vld [vmem:[%s589 + $0x4] sm:$0xf]
        %v1911 = vld [vmem:[%s589 + $0x8] sm:$0xf]
        %v1912 = vld [vmem:[%s589 + $0xc] sm:$0xf]
        %v1913 = vld [vmem:[%s589 + $0x10] sm:$0xf]
        %v1914 = vld [vmem:[%s589 + $0x14] sm:$0xf]
        %v1915 = vld [vmem:[%s589 + $0x18] sm:$0xf]
        %v1916 = vld [vmem:[%s589 + $0x1c] sm:$0xf]
        %v1917 = vld [vmem:[%s589 + $0x20] sm:$0xf]
        %v1918 = vld [vmem:[%s589 + $0x24] sm:$0xf]
        %v1919 = vld [vmem:[%s589 + $0x28] sm:$0xf]
        %v1920 = vld [vmem:[%s589 + $0x2c] sm:$0xf]
        %v1921 = vld [vmem:[%s589 + $0x30] sm:$0xf]
        %v1922 = vld [vmem:[%s589 + $0x34] sm:$0xf]
        %v1923 = vld [vmem:[%s589 + $0x38] sm:$0xf]
        %v1924 = vld [vmem:[%s589 + $0x3c] sm:$0xf]
        %v1925 = vpack.c.bf16 %v1241, %v1241
        %v1926 = vpack.c.bf16 %v1244, %v1244
        %v1927 = vpack.c.bf16 %v950, %v950
        %v1928 = vpack.c.bf16 %v954, %v954
        %v1931 = vunpack.c.l.s4 1966171168
        %v1932 = vunpack.c.0.s8 %v1931
        %v1933 = vlaneseq
        %v1934 = vshrl.u32 %v1933, 7
        %v1935 = vsub.s32 %v1932, %v1934
        %v1936 = vrot.slane %v741, %v1935
        %v1937 = vcombine.high %v1936, %v1936
        %v1939 = vunpack.c.l.s4 1966171168
        %v1940 = vunpack.c.0.s8 %v1939
        %v1941 = vlaneseq
        %v1942 = vshrl.u32 %v1941, 7
        %v1943 = vsub.s32 %v1940, %v1942
        %v1944 = vrot.slane %v1936, %v1943
        %v1946 = vunpack.c.l.s4 1966171168
        %v1947 = vunpack.c.0.s8 %v1946
        %v1948 = vlaneseq
        %v1949 = vshrl.u32 %v1948, 7
        %v1950 = vsub.s32 %v1947, %v1949
        %v1951 = vrot.slane %v1937, %v1950
        %v1952 = vlaneseq
        %v1953 = vshrl.u32 %v1952, 7
        %v1954 = vsub.s32 0, %v1953
        %v1955 = vrot.slane %v1944, %v1954
        %v1956 = vlaneseq
        %v1957 = vshrl.u32 %v1956, 7
        %v1958 = vsub.s32 0, %v1957
        %v1959 = vrot.slane %v1951, %v1958
        %1962 = vmatprep.subr.bf16.mxu0 0
        %1963 = vmatpush1.bf16.xpose.msra.mxu0 %v1927
        %1964 = vmatprep.subr.bf16.mxu0 0
        %1965 = vmatpush1.bf16.xpose.msra.mxu0 0
        %1966 = vmatprep.subr.bf16.mxu0 0
        %1967 = vmatpush1.bf16.xpose.msra.mxu0 0
        %1968 = vmatprep.subr.bf16.mxu0 0
        %1969 = vmatpush1.bf16.xpose.msra.mxu0 0
        %1970 = vmatprep.subr.bf16.mxu0 0
        %1971 = vmatpush1.bf16.xpose.msra.mxu0 0
        %1972 = vmatprep.subr.bf16.mxu0 0
        %1973 = vmatpush1.bf16.xpose.msra.mxu0 0
        %1974 = vmatprep.subr.bf16.mxu0 0
        %1975 = vmatpush1.bf16.xpose.msra.mxu0 0
        %1976 = vmatprep.subr.bf16.mxu0 0
        %1977 = vmatpush1.bf16.xpose.msra.mxu0 0
        %1978 = vmatprep.subr.bf16.mxu0 0
        %1979 = vmatpush1.bf16.xpose.msra.mxu0 0
        %1980 = vmatprep.subr.bf16.mxu0 0
        %1981 = vmatpush1.bf16.xpose.msra.mxu0 0
        %1982 = vmatprep.subr.bf16.mxu0 0
        %1983 = vmatpush1.bf16.xpose.msra.mxu0 0
        %1984 = vmatprep.subr.bf16.mxu0 0
        %1985 = vmatpush1.bf16.xpose.msra.mxu0 0
        %1986 = vmatprep.subr.bf16.mxu0 0
        %1987 = vmatpush1.bf16.xpose.msra.mxu0 0
        %1988 = vmatprep.subr.bf16.mxu0 0
        %1989 = vmatpush1.bf16.xpose.msra.mxu0 0
        %1990 = vmatprep.subr.bf16.mxu0 0
        %1991 = vmatpush1.bf16.xpose.msra.mxu0 0
        %1992 = vmatprep.subr.bf16.mxu0 0
        %1993 = vmatpush1.bf16.xpose.msra.mxu0 0
        %1994 = vmatprep.mubr.bf16.mxu0 0
        %1995 = vmatmul.mubr.bf16.gmra.mrb[0].mxu0 %v1925
        %v1996 = vpop.f32.mrb[0].mxu0
        %v1997 = vadd.f32 %v1955, %v1996
        %v1998 = vpop.f32.mrb[0].mxu0
        %v1999 = vpop.f32.mrb[0].mxu0
        %v2000 = vpop.f32.mrb[0].mxu0
        %2001 = vdwg.mxu0
        %2002 = vmatprep.subr.bf16.mxu0 0
        %2003 = vmatpush1.bf16.xpose.msra.mxu0 %v1928
        %2004 = vmatprep.subr.bf16.mxu0 0
        %2005 = vmatpush1.bf16.xpose.msra.mxu0 0
        %2006 = vmatprep.subr.bf16.mxu0 0
        %2007 = vmatpush1.bf16.xpose.msra.mxu0 0
        %2008 = vmatprep.subr.bf16.mxu0 0
        %2009 = vmatpush1.bf16.xpose.msra.mxu0 0
        %2010 = vmatprep.subr.bf16.mxu0 0
        %2011 = vmatpush1.bf16.xpose.msra.mxu0 0
        %2012 = vmatprep.subr.bf16.mxu0 0
        %2013 = vmatpush1.bf16.xpose.msra.mxu0 0
        %2014 = vmatprep.subr.bf16.mxu0 0
        %2015 = vmatpush1.bf16.xpose.msra.mxu0 0
        %2016 = vmatprep.subr.bf16.mxu0 0
        %2017 = vmatpush1.bf16.xpose.msra.mxu0 0
        %2018 = vmatprep.subr.bf16.mxu0 0
        %2019 = vmatpush1.bf16.xpose.msra.mxu0 0
        %2020 = vmatprep.subr.bf16.mxu0 0
        %2021 = vmatpush1.bf16.xpose.msra.mxu0 0
        %2022 = vmatprep.subr.bf16.mxu0 0
        %2023 = vmatpush1.bf16.xpose.msra.mxu0 0
        %2024 = vmatprep.subr.bf16.mxu0 0
        %2025 = vmatpush1.bf16.xpose.msra.mxu0 0
        %2026 = vmatprep.subr.bf16.mxu0 0
        %2027 = vmatpush1.bf16.xpose.msra.mxu0 0
        %2028 = vmatprep.subr.bf16.mxu0 0
        %2029 = vmatpush1.bf16.xpose.msra.mxu0 0
        %2030 = vmatprep.subr.bf16.mxu0 0
        %2031 = vmatpush1.bf16.xpose.msra.mxu0 0
        %2032 = vmatprep.subr.bf16.mxu0 0
        %2033 = vmatpush1.bf16.xpose.msra.mxu0 0
        %2034 = vmatprep.mubr.bf16.mxu0 0
        %2035 = vmatmul.mubr.bf16.gmra.mrb[0].mxu0 %v1926
        %v2036 = vpop.f32.mrb[0].mxu0
        %v2037 = vadd.f32 %v1959, %v2036
        %v2038 = vpop.f32.mrb[0].mxu0
        %v2039 = vpop.f32.mrb[0].mxu0
        %v2040 = vpop.f32.mrb[0].mxu0
        %2041 = vdwg.mxu0
        %v2042 = vsel %vm1380, %v1997, -inf
        %2043 = vmax.xlane.f32.xlu0 %v2042
        %v2044 = vpop.xlane.xlu0 %2043
        %v2045 = vsel %vm1380, %v2037, -inf
        %2046 = vmax.xlane.f32.xlu0 %v2045
        %v2047 = vpop.xlane.xlu0 %2046
        %v2048 = vsub.f32 %v1997, %v2044
        %v2049 = vsub.f32 %v2037, %v2047
        %v2050 = vmul.f32 %v2048, 1.442695
        %v2051 = vpow.pop %v2050
        %v2052 = vmul.f32 %v2049, 1.442695
        %v2053 = vpow.pop %v2052
        %v2054 = vsel %vm1380, %v2051, 0.0
        %2055 = vadd.xlane.f32.xlu0 %v2054
        %v2056 = vpop.xlane.xlu0 %2055
        %v2057 = vsel %vm1380, %v2053, 0.0
        %2058 = vadd.xlane.f32.xlu0 %v2057
        %v2059 = vpop.xlane.xlu0 %2058
        %v2060 = vrcp.pop %v2056
        %v2061 = vrcp.pop %v2059
        %v2062 = vmul.f32 %v2051, %v2060
        %v2063 = vmul.f32 %v2053, %v2061
        %v2064 = vpack.c.bf16 %v2062, %v2062
        %v2065 = vpack.c.bf16 %v2063, %v2063
        %v2066 = vpack.c.bf16 %v991, %v991
        %v2067 = vpack.c.bf16 %v994, %v994
        %v2069 = vsel %vm1380, %v2064, 0
        %v2072 = vsel %vm1410, %v2066, 0
        %2074 = vmatprep.subr.bf16.mxu0 0
        %2075 = vmatpush1.bf16.msra.mxu0 %v2072
        %2076 = vmatprep.subr.bf16.mxu0 0
        %2077 = vmatpush1.bf16.msra.mxu0 0
        %2078 = vmatprep.subr.bf16.mxu0 0
        %2079 = vmatpush1.bf16.msra.mxu0 0
        %2080 = vmatprep.subr.bf16.mxu0 0
        %2081 = vmatpush1.bf16.msra.mxu0 0
        %2082 = vmatprep.subr.bf16.mxu0 0
        %2083 = vmatpush1.bf16.msra.mxu0 0
        %2084 = vmatprep.subr.bf16.mxu0 0
        %2085 = vmatpush1.bf16.msra.mxu0 0
        %2086 = vmatprep.subr.bf16.mxu0 0
        %2087 = vmatpush1.bf16.msra.mxu0 0
        %2088 = vmatprep.subr.bf16.mxu0 0
        %2089 = vmatpush1.bf16.msra.mxu0 0
        %2090 = vmatprep.subr.bf16.mxu0 0
        %2091 = vmatpush1.bf16.msra.mxu0 0
        %2092 = vmatprep.subr.bf16.mxu0 0
        %2093 = vmatpush1.bf16.msra.mxu0 0
        %2094 = vmatprep.subr.bf16.mxu0 0
        %2095 = vmatpush1.bf16.msra.mxu0 0
        %2096 = vmatprep.subr.bf16.mxu0 0
        %2097 = vmatpush1.bf16.msra.mxu0 0
        %2098 = vmatprep.subr.bf16.mxu0 0
        %2099 = vmatpush1.bf16.msra.mxu0 0
        %2100 = vmatprep.subr.bf16.mxu0 0
        %2101 = vmatpush1.bf16.msra.mxu0 0
        %2102 = vmatprep.subr.bf16.mxu0 0
        %2103 = vmatpush1.bf16.msra.mxu0 0
        %2104 = vmatprep.subr.bf16.mxu0 0
        %2105 = vmatpush1.bf16.msra.mxu0 0
        %2106 = vmatprep.mubr.bf16.mxu0 0
        %2107 = vmatmul.mubr.bf16.gmra.mrb[0].mxu0 %v2069
        %v2108 = vpop.f32.mrb[0].mxu0
        %v2109 = vadd.f32 0.0, %v2108
        %v2110 = vpop.f32.mrb[0].mxu0
        %v2111 = vpop.f32.mrb[0].mxu0
        %v2112 = vpop.f32.mrb[0].mxu0
        %2113 = vdwg.mxu0
        %v2115 = vsel %vm1380, %v2065, 0
        %v2118 = vsel %vm1410, %v2067, 0
        %2120 = vmatprep.subr.bf16.mxu0 0
        %2121 = vmatpush1.bf16.msra.mxu0 %v2118
        %2122 = vmatprep.subr.bf16.mxu0 0
        %2123 = vmatpush1.bf16.msra.mxu0 0
        %2124 = vmatprep.subr.bf16.mxu0 0
        %2125 = vmatpush1.bf16.msra.mxu0 0
        %2126 = vmatprep.subr.bf16.mxu0 0
        %2127 = vmatpush1.bf16.msra.mxu0 0
        %2128 = vmatprep.subr.bf16.mxu0 0
        %2129 = vmatpush1.bf16.msra.mxu0 0
        %2130 = vmatprep.subr.bf16.mxu0 0
        %2131 = vmatpush1.bf16.msra.mxu0 0
        %2132 = vmatprep.subr.bf16.mxu0 0
        %2133 = vmatpush1.bf16.msra.mxu0 0
        %2134 = vmatprep.subr.bf16.mxu0 0
        %2135 = vmatpush1.bf16.msra.mxu0 0
        %2136 = vmatprep.subr.bf16.mxu0 0
        %2137 = vmatpush1.bf16.msra.mxu0 0
        %2138 = vmatprep.subr.bf16.mxu0 0
        %2139 = vmatpush1.bf16.msra.mxu0 0
        %2140 = vmatprep.subr.bf16.mxu0 0
        %2141 = vmatpush1.bf16.msra.mxu0 0
        %2142 = vmatprep.subr.bf16.mxu0 0
        %2143 = vmatpush1.bf16.msra.mxu0 0
        %2144 = vmatprep.subr.bf16.mxu0 0
        %2145 = vmatpush1.bf16.msra.mxu0 0
        %2146 = vmatprep.subr.bf16.mxu0 0
        %2147 = vmatpush1.bf16.msra.mxu0 0
        %2148 = vmatprep.subr.bf16.mxu0 0
        %2149 = vmatpush1.bf16.msra.mxu0 0
        %2150 = vmatprep.subr.bf16.mxu0 0
        %2151 = vmatpush1.bf16.msra.mxu0 0
        %2152 = vmatprep.mubr.bf16.mxu0 0
        %2153 = vmatmul.mubr.bf16.gmra.mrb[0].mxu0 %v2115
        %v2154 = vpop.f32.mrb[0].mxu0
        %v2155 = vadd.f32 0.0, %v2154
        %v2156 = vpop.f32.mrb[0].mxu0
        %v2157 = vpop.f32.mrb[0].mxu0
        %v2158 = vpop.f32.mrb[0].mxu0
        %2159 = vdwg.mxu0
        %v2160 = vpack.c.bf16 %v2155, %v2109
        %v2177 = vunpack.c.l.b16 %v1909
        %v2178 = vunpack.c.l.b16 %v1910
        %v2179 = vunpack.c.l.b16 %v1911
        %v2180 = vunpack.c.l.b16 %v1912
        %v2181 = vunpack.c.l.b16 %v1913
        %v2182 = vunpack.c.l.b16 %v1914
        %v2183 = vunpack.c.l.b16 %v1915
        %v2184 = vunpack.c.l.b16 %v1916
        %v2185 = vunpack.c.l.b16 %v1917
        %v2186 = vunpack.c.l.b16 %v1918
        %v2187 = vunpack.c.l.b16 %v1919
        %v2188 = vunpack.c.l.b16 %v1920
        %v2189 = vunpack.c.l.b16 %v1921
        %v2190 = vunpack.c.l.b16 %v1922
        %v2191 = vunpack.c.l.b16 %v1923
        %v2192 = vunpack.c.l.b16 %v1924
        %v2193 = vpack.c.b16 %v2178, %v2177
        %v2194 = vpack.c.b16 %v2180, %v2179
        %v2195 = vpack.c.b16 %v2182, %v2181
        %v2196 = vpack.c.b16 %v2184, %v2183
        %v2197 = vpack.c.b16 %v2186, %v2185
        %v2198 = vpack.c.b16 %v2188, %v2187
        %v2199 = vpack.c.b16 %v2190, %v2189
        %v2200 = vpack.c.b16 %v2192, %v2191
        %2209 = vmatprep.subr.bf16.mxu0 0
        %2210 = vmatpush1.bf16.msra.mxu0 %v2193
        %2211 = vmatprep.subr.bf16.mxu0 0
        %2212 = vmatpush1.bf16.msra.mxu0 %v2194
        %2213 = vmatprep.subr.bf16.mxu0 0
        %2214 = vmatpush1.bf16.msra.mxu0 %v2195
        %2215 = vmatprep.subr.bf16.mxu0 0
        %2216 = vmatpush1.bf16.msra.mxu0 %v2196
        %2217 = vmatprep.subr.bf16.mxu0 0
        %2218 = vmatpush1.bf16.msra.mxu0 %v2197
        %2219 = vmatprep.subr.bf16.mxu0 0
        %2220 = vmatpush1.bf16.msra.mxu0 %v2198
        %2221 = vmatprep.subr.bf16.mxu0 0
        %2222 = vmatpush1.bf16.msra.mxu0 %v2199
        %2223 = vmatprep.subr.bf16.mxu0 0
        %2224 = vmatpush1.bf16.msra.mxu0 %v2200
        %2225 = vmatprep.subr.bf16.mxu0 0
        %2226 = vmatpush1.bf16.msra.mxu0 0
        %2227 = vmatprep.subr.bf16.mxu0 0
        %2228 = vmatpush1.bf16.msra.mxu0 0
        %2229 = vmatprep.subr.bf16.mxu0 0
        %2230 = vmatpush1.bf16.msra.mxu0 0
        %2231 = vmatprep.subr.bf16.mxu0 0
        %2232 = vmatpush1.bf16.msra.mxu0 0
        %2233 = vmatprep.subr.bf16.mxu0 0
        %2234 = vmatpush1.bf16.msra.mxu0 0
        %2235 = vmatprep.subr.bf16.mxu0 0
        %2236 = vmatpush1.bf16.msra.mxu0 0
        %2237 = vmatprep.subr.bf16.mxu0 0
        %2238 = vmatpush1.bf16.msra.mxu0 0
        %2239 = vmatprep.subr.bf16.mxu0 0
        %2240 = vmatpush1.bf16.msra.mxu0 0
        %2241 = vmatprep.mubr.bf16.mxu0 0
        %2242 = vmatmul.mubr.bf16.gmra.mrb[0].mxu0 %v2160
        %v2243 = vpop.f32.mrb[0].mxu0
        %v2244 = vadd.f32 0.0, %v2243
        %v2245 = vpop.f32.mrb[0].mxu0
        %v2246 = vpop.f32.mrb[0].mxu0
        %v2247 = vadd.f32 0.0, %v2246
        %v2248 = vpop.f32.mrb[0].mxu0
        %2249 = vdwg.mxu0
        %v2250 = vadd.f32 %v739, %v2244
        %v2251 = vadd.f32 %v740, %v2247
        %v2252 = vld [vmem:[%s616] sm:$0xff]
        %v2253 = vld [vmem:[%s616 + $0x8] sm:$0xff]
        %v2254 = vld [vmem:[%s616 + $0x10] sm:$0xff]
        %v2255 = vld [vmem:[%s616 + $0x18] sm:$0xff]
        %v2256 = vld [vmem:[%s616 + $0x20] sm:$0xff]
        %v2257 = vld [vmem:[%s616 + $0x28] sm:$0xff]
        %v2258 = vld [vmem:[%s616 + $0x30] sm:$0xff]
        %v2259 = vld [vmem:[%s616 + $0x38] sm:$0xff]
        %v2260 = vld [vmem:[%s616 + $0x40] sm:$0xff]
        %v2261 = vld [vmem:[%s616 + $0x48] sm:$0xff]
        %v2262 = vld [vmem:[%s616 + $0x50] sm:$0xff]
        %v2263 = vld [vmem:[%s616 + $0x58] sm:$0xff]
        %v2264 = vld [vmem:[%s616 + $0x60] sm:$0xff]
        %v2265 = vld [vmem:[%s616 + $0x68] sm:$0xff]
        %v2266 = vld [vmem:[%s616 + $0x70] sm:$0xff]
        %v2267 = vld [vmem:[%s616 + $0x78] sm:$0xff]
        %v2268 = vld [vmem:[%s625] sm:$0xf]
        %v2269 = vld [vmem:[%s625 + $0x4] sm:$0xf]
        %v2270 = vld [vmem:[%s625 + $0x8] sm:$0xf]
        %v2271 = vld [vmem:[%s625 + $0xc] sm:$0xf]
        %v2272 = vld [vmem:[%s625 + $0x10] sm:$0xf]
        %v2273 = vld [vmem:[%s625 + $0x14] sm:$0xf]
        %v2274 = vld [vmem:[%s625 + $0x18] sm:$0xf]
        %v2275 = vld [vmem:[%s625 + $0x1c] sm:$0xf]
        %v2276 = vld [vmem:[%s625 + $0x20] sm:$0xf]
        %v2277 = vld [vmem:[%s625 + $0x24] sm:$0xf]
        %v2278 = vld [vmem:[%s625 + $0x28] sm:$0xf]
        %v2279 = vld [vmem:[%s625 + $0x2c] sm:$0xf]
        %v2280 = vld [vmem:[%s625 + $0x30] sm:$0xf]
        %v2281 = vld [vmem:[%s625 + $0x34] sm:$0xf]
        %v2282 = vld [vmem:[%s625 + $0x38] sm:$0xf]
        %v2283 = vld [vmem:[%s625 + $0x3c] sm:$0xf]
        %v2284 = vld [vmem:[%s625 + $0x40] sm:$0xf]
        %v2285 = vld [vmem:[%s625 + $0x44] sm:$0xf]
        %v2286 = vld [vmem:[%s625 + $0x48] sm:$0xf]
        %v2287 = vld [vmem:[%s625 + $0x4c] sm:$0xf]
        %v2288 = vld [vmem:[%s625 + $0x50] sm:$0xf]
        %v2289 = vld [vmem:[%s625 + $0x54] sm:$0xf]
        %v2290 = vld [vmem:[%s625 + $0x58] sm:$0xf]
        %v2291 = vld [vmem:[%s625 + $0x5c] sm:$0xf]
        %v2292 = vld [vmem:[%s625 + $0x60] sm:$0xf]
        %v2293 = vld [vmem:[%s625 + $0x64] sm:$0xf]
        %v2294 = vld [vmem:[%s625 + $0x68] sm:$0xf]
        %v2295 = vld [vmem:[%s625 + $0x6c] sm:$0xf]
        %v2296 = vld [vmem:[%s625 + $0x70] sm:$0xf]
        %v2297 = vld [vmem:[%s625 + $0x74] sm:$0xf]
        %v2298 = vld [vmem:[%s625 + $0x78] sm:$0xf]
        %v2299 = vld [vmem:[%s625 + $0x7c] sm:$0xf]
        %v2300 = vpack.c.bf16 %v2251, %v2250
        %v2317 = vunpack.c.l.b16 %v2252
        %v2318 = vunpack.c.h.b16 %v2252
        %v2319 = vunpack.c.l.b16 %v2253
        %v2320 = vunpack.c.h.b16 %v2253
        %v2321 = vunpack.c.l.b16 %v2254
        %v2322 = vunpack.c.h.b16 %v2254
        %v2323 = vunpack.c.l.b16 %v2255
        %v2324 = vunpack.c.h.b16 %v2255
        %v2325 = vunpack.c.l.b16 %v2256
        %v2326 = vunpack.c.h.b16 %v2256
        %v2327 = vunpack.c.l.b16 %v2257
        %v2328 = vunpack.c.h.b16 %v2257
        %v2329 = vunpack.c.l.b16 %v2258
        %v2330 = vunpack.c.h.b16 %v2258
        %v2331 = vunpack.c.l.b16 %v2259
        %v2332 = vunpack.c.h.b16 %v2259
        %v2333 = vunpack.c.l.b16 %v2260
        %v2334 = vunpack.c.h.b16 %v2260
        %v2335 = vunpack.c.l.b16 %v2261
        %v2336 = vunpack.c.h.b16 %v2261
        %v2337 = vunpack.c.l.b16 %v2262
        %v2338 = vunpack.c.h.b16 %v2262
        %v2339 = vunpack.c.l.b16 %v2263
        %v2340 = vunpack.c.h.b16 %v2263
        %v2341 = vunpack.c.l.b16 %v2264
        %v2342 = vunpack.c.h.b16 %v2264
        %v2343 = vunpack.c.l.b16 %v2265
        %v2344 = vunpack.c.h.b16 %v2265
        %v2345 = vunpack.c.l.b16 %v2266
        %v2346 = vunpack.c.h.b16 %v2266
        %v2347 = vunpack.c.l.b16 %v2267
        %v2348 = vunpack.c.h.b16 %v2267
        %v2349 = vpack.c.b16 %v2319, %v2317
        %v2350 = vpack.c.b16 %v2320, %v2318
        %v2351 = vpack.c.b16 %v2323, %v2321
        %v2352 = vpack.c.b16 %v2324, %v2322
        %v2353 = vpack.c.b16 %v2327, %v2325
        %v2354 = vpack.c.b16 %v2328, %v2326
        %v2355 = vpack.c.b16 %v2331, %v2329
        %v2356 = vpack.c.b16 %v2332, %v2330
        %v2357 = vpack.c.b16 %v2335, %v2333
        %v2358 = vpack.c.b16 %v2336, %v2334
        %v2359 = vpack.c.b16 %v2339, %v2337
        %v2360 = vpack.c.b16 %v2340, %v2338
        %v2361 = vpack.c.b16 %v2343, %v2341
        %v2362 = vpack.c.b16 %v2344, %v2342
        %v2363 = vpack.c.b16 %v2347, %v2345
        %v2364 = vpack.c.b16 %v2348, %v2346
        %2381 = vmatprep.subr.bf16.mxu0 %v2350
        %2382 = vmatpush1.bf16.msra.mxu0 %v2349
        %2383 = vmatprep.subr.bf16.mxu0 %v2352
        %2384 = vmatpush1.bf16.msra.mxu0 %v2351
        %2385 = vmatprep.subr.bf16.mxu0 %v2354
        %2386 = vmatpush1.bf16.msra.mxu0 %v2353
        %2387 = vmatprep.subr.bf16.mxu0 %v2356
        %2388 = vmatpush1.bf16.msra.mxu0 %v2355
        %2389 = vmatprep.subr.bf16.mxu0 %v2358
        %2390 = vmatpush1.bf16.msra.mxu0 %v2357
        %2391 = vmatprep.subr.bf16.mxu0 %v2360
        %2392 = vmatpush1.bf16.msra.mxu0 %v2359
        %2393 = vmatprep.subr.bf16.mxu0 %v2362
        %2394 = vmatpush1.bf16.msra.mxu0 %v2361
        %2395 = vmatprep.subr.bf16.mxu0 %v2364
        %2396 = vmatpush1.bf16.msra.mxu0 %v2363
        %2397 = vmatprep.subr.bf16.mxu0 0
        %2398 = vmatpush1.bf16.msra.mxu0 0
        %2399 = vmatprep.subr.bf16.mxu0 0
        %2400 = vmatpush1.bf16.msra.mxu0 0
        %2401 = vmatprep.subr.bf16.mxu0 0
        %2402 = vmatpush1.bf16.msra.mxu0 0
        %2403 = vmatprep.subr.bf16.mxu0 0
        %2404 = vmatpush1.bf16.msra.mxu0 0
        %2405 = vmatprep.subr.bf16.mxu0 0
        %2406 = vmatpush1.bf16.msra.mxu0 0
        %2407 = vmatprep.subr.bf16.mxu0 0
        %2408 = vmatpush1.bf16.msra.mxu0 0
        %2409 = vmatprep.subr.bf16.mxu0 0
        %2410 = vmatpush1.bf16.msra.mxu0 0
        %2411 = vmatprep.subr.bf16.mxu0 0
        %2412 = vmatpush1.bf16.msra.mxu0 0
        %2413 = vmatprep.mubr.bf16.mxu0 0
        %2414 = vmatmul.mubr.bf16.gmra.mrb[0].mxu0 %v2300
        %v2415 = vpop.f32.mrb[0].mxu0
        %v2416 = vadd.f32 0.0, %v2415
        %v2417 = vpop.f32.mrb[0].mxu0
        %v2418 = vadd.f32 0.0, %v2417
        %v2419 = vpop.f32.mrb[0].mxu0
        %v2420 = vadd.f32 0.0, %v2419
        %v2421 = vpop.f32.mrb[0].mxu0
        %v2422 = vadd.f32 0.0, %v2421
        %2423 = vdwg.mxu0
        %v2424 = vmax.f32 %v2416, 0.0
        %v2425 = vmax.f32 %v2418, 0.0
        %v2426 = vmax.f32 %v2420, 0.0
        %v2427 = vmax.f32 %v2422, 0.0
        %v2428 = vpack.c.bf16 %v2426, %v2424
        %v2429 = vpack.c.bf16 %v2427, %v2425
        %v2462 = vunpack.c.l.b16 %v2268
        %v2463 = vunpack.c.l.b16 %v2269
        %v2464 = vunpack.c.l.b16 %v2270
        %v2465 = vunpack.c.l.b16 %v2271
        %v2466 = vunpack.c.l.b16 %v2272
        %v2467 = vunpack.c.l.b16 %v2273
        %v2468 = vunpack.c.l.b16 %v2274
        %v2469 = vunpack.c.l.b16 %v2275
        %v2470 = vunpack.c.l.b16 %v2276
        %v2471 = vunpack.c.l.b16 %v2277
        %v2472 = vunpack.c.l.b16 %v2278
        %v2473 = vunpack.c.l.b16 %v2279
        %v2474 = vunpack.c.l.b16 %v2280
        %v2475 = vunpack.c.l.b16 %v2281
        %v2476 = vunpack.c.l.b16 %v2282
        %v2477 = vunpack.c.l.b16 %v2283
        %v2478 = vunpack.c.l.b16 %v2284
        %v2479 = vunpack.c.l.b16 %v2285
        %v2480 = vunpack.c.l.b16 %v2286
        %v2481 = vunpack.c.l.b16 %v2287
        %v2482 = vunpack.c.l.b16 %v2288
        %v2483 = vunpack.c.l.b16 %v2289
        %v2484 = vunpack.c.l.b16 %v2290
        %v2485 = vunpack.c.l.b16 %v2291
        %v2486 = vunpack.c.l.b16 %v2292
        %v2487 = vunpack.c.l.b16 %v2293
        %v2488 = vunpack.c.l.b16 %v2294
        %v2489 = vunpack.c.l.b16 %v2295
        %v2490 = vunpack.c.l.b16 %v2296
        %v2491 = vunpack.c.l.b16 %v2297
        %v2492 = vunpack.c.l.b16 %v2298
        %v2493 = vunpack.c.l.b16 %v2299
        %v2494 = vpack.c.b16 %v2463, %v2462
        %v2495 = vpack.c.b16 %v2465, %v2464
        %v2496 = vpack.c.b16 %v2467, %v2466
        %v2497 = vpack.c.b16 %v2469, %v2468
        %v2498 = vpack.c.b16 %v2471, %v2470
        %v2499 = vpack.c.b16 %v2473, %v2472
        %v2500 = vpack.c.b16 %v2475, %v2474
        %v2501 = vpack.c.b16 %v2477, %v2476
        %v2502 = vpack.c.b16 %v2479, %v2478
        %v2503 = vpack.c.b16 %v2481, %v2480
        %v2504 = vpack.c.b16 %v2483, %v2482
        %v2505 = vpack.c.b16 %v2485, %v2484
        %v2506 = vpack.c.b16 %v2487, %v2486
        %v2507 = vpack.c.b16 %v2489, %v2488
        %v2508 = vpack.c.b16 %v2491, %v2490
        %v2509 = vpack.c.b16 %v2493, %v2492
        %2526 = vmatprep.subr.bf16.mxu0 0
        %2527 = vmatpush1.bf16.msra.mxu0 %v2494
        %2528 = vmatprep.subr.bf16.mxu0 0
        %2529 = vmatpush1.bf16.msra.mxu0 %v2495
        %2530 = vmatprep.subr.bf16.mxu0 0
        %2531 = vmatpush1.bf16.msra.mxu0 %v2496
        %2532 = vmatprep.subr.bf16.mxu0 0
        %2533 = vmatpush1.bf16.msra.mxu0 %v2497
        %2534 = vmatprep.subr.bf16.mxu0 0
        %2535 = vmatpush1.bf16.msra.mxu0 %v2498
        %2536 = vmatprep.subr.bf16.mxu0 0
        %2537 = vmatpush1.bf16.msra.mxu0 %v2499
        %2538 = vmatprep.subr.bf16.mxu0 0
        %2539 = vmatpush1.bf16.msra.mxu0 %v2500
        %2540 = vmatprep.subr.bf16.mxu0 0
        %2541 = vmatpush1.bf16.msra.mxu0 %v2501
        %2542 = vmatprep.subr.bf16.mxu0 0
        %2543 = vmatpush1.bf16.msra.mxu0 %v2502
        %2544 = vmatprep.subr.bf16.mxu0 0
        %2545 = vmatpush1.bf16.msra.mxu0 %v2503
        %2546 = vmatprep.subr.bf16.mxu0 0
        %2547 = vmatpush1.bf16.msra.mxu0 %v2504
        %2548 = vmatprep.subr.bf16.mxu0 0
        %2549 = vmatpush1.bf16.msra.mxu0 %v2505
        %2550 = vmatprep.subr.bf16.mxu0 0
        %2551 = vmatpush1.bf16.msra.mxu0 %v2506
        %2552 = vmatprep.subr.bf16.mxu0 0
        %2553 = vmatpush1.bf16.msra.mxu0 %v2507
        %2554 = vmatprep.subr.bf16.mxu0 0
        %2555 = vmatpush1.bf16.msra.mxu0 %v2508
        %2556 = vmatprep.subr.bf16.mxu0 0
        %2557 = vmatpush1.bf16.msra.mxu0 %v2509
        %2558 = vmatprep.mubr.bf16.mxu0 %v2429
        %2559 = vmatmul.mubr.bf16.gmra.mrb[0].mxu0 %v2428
        %v2560 = vpop.f32.mrb[0].mxu0
        %v2561 = vadd.f32 0.0, %v2560
        %v2562 = vpop.f32.mrb[0].mxu0
        %v2563 = vpop.f32.mrb[0].mxu0
        %v2564 = vadd.f32 0.0, %v2563
        %v2565 = vpop.f32.mrb[0].mxu0
        %2566 = vdwg.mxu0
        %v2567 = vadd.f32 %v2250, %v2561
        %v2568 = vadd.f32 %v2251, %v2564
        %2569 = vst [vmem:[#allocation2] sm:$0xff] %v1907
        %2570 = vst [vmem:[#allocation2 + $0x8] sm:$0xff] %v1908
        %2571 = vst [vmem:[#allocation3] sm:$0xff] %v2567
        %2572 = vst [vmem:[#allocation3 + $0x8] sm:$0xff] %v2568
        %p2573 = scmp.eq.s32.totalorder %s47, 1
        // Predicated region
        $region107: #{tpu_custom_call.1} parent=59 // pred_check
          %p2574 = pneg %p2573
        $region108: #{tpu_custom_call.1} parent=59 // pred_check_branch
          %2576 = sbr.rel (%p2574) target = $region110
        $region109: #{tpu_custom_call.1} parent=59 // pred_region
          %2577 = vst [vmem:[#allocation20] sm:$0xff] %v1907
          %2578 = vst [vmem:[#allocation20 + $0x8] sm:$0xff] %v1908
          %2579 = vst [vmem:[#allocation21] sm:$0xff] %v2567
          %2580 = vst [vmem:[#allocation21 + $0x8] sm:$0xff] %v2568
        $region110: #{tpu_custom_call.1} parent=59 // pred_fallthru
          _
        // Predicated region
        $region111: #{tpu_custom_call.1} parent=59 // pred_check
          %p2581 = pneg %p326
        $region112: #{tpu_custom_call.1} parent=59 // pred_check_branch
          %2583 = sbr.rel (%p2581) target = $region114
        $region113: #{tpu_custom_call.1} parent=59 // pred_region
          %s2585 = ssub.s32 256, 256
          %2586 = vsyncadd [#allocation8], %s2585
          %s2587 = sshll.u32 [#allocation20], 4
          %s2588 = int_to_ptr.vmem [resolvable:$true] %s2587
          %2593 = dma.vmem_to_hbm [thread:$0]  %s2588, 256, %s13, [#allocation8], 128, 128, 8
        $region114: #{tpu_custom_call.1} parent=59 // pred_fallthru
          _
        // Predicated region
        $region115: #{tpu_custom_call.1} parent=59 // pred_check
          %p2594 = pneg %p347
        $region116: #{tpu_custom_call.1} parent=59 // pred_check_branch
          %2596 = sbr.rel (%p2594) target = $region118
        $region117: #{tpu_custom_call.1} parent=59 // pred_region
          %s2598 = ssub.s32 256, 256
          %2599 = vsyncadd [#allocation22], %s2598
          %s2600 = sshll.u32 [#allocation21], 4
          %s2601 = int_to_ptr.vmem [resolvable:$true] %s2600
          %2606 = dma.vmem_to_hbm [thread:$0]  %s2601, 256, %s14, [#allocation22], 128, 128, 8
        $region118: #{tpu_custom_call.1} parent=59 // pred_fallthru
          _
        // Predicated region
        $region119: #{tpu_custom_call.1} parent=59 // pred_check
          %p2607 = pneg %p326
        $region120: #{tpu_custom_call.1} parent=59 // pred_check_branch
          %2609 = sbr.rel (%p2607) target = $region122
        $region121: #{tpu_custom_call.1} parent=59 // pred_region
          %2610 = dma.done [#allocation8], 256
        $region122: #{tpu_custom_call.1} parent=59 // pred_fallthru
          _
        // Predicated region
        $region123: #{tpu_custom_call.1} parent=59 // pred_check
          %p2611 = pneg %p347
        $region124: #{tpu_custom_call.1} parent=59 // pred_check_branch
          %2613 = sbr.rel (%p2611) target = $region126
        $region125: #{tpu_custom_call.1} parent=59 // pred_region
          %2614 = dma.done [#allocation22], 256
        $region126: #{tpu_custom_call.1} parent=59 // pred_fallthru
          _
      $region60: #{tpu_custom_call.1} parent=5 // pred_fallthru
        _
      %p2615 = scmp.le.s32.totalorder 2, %s42
      // Predicated region
      $region127: #{tpu_custom_call.1} parent=5 // pred_check
        %p2616 = pneg %p2615
      $region128: #{tpu_custom_call.1} parent=5 // pred_check_branch
        %2618 = sbr.rel (%p2616) target = $region130
      $region129: #{tpu_custom_call.1} parent=5 // pred_region
        %s2619 = ssub.s32 %s42, 2
      $region130: #{tpu_custom_call.1} parent=5 // pred_fallthru
        _
    $region6: #{tpu_custom_call.1} parent=1 // loop_footer
      %s46 = sadd.s32 1, %s42
    $region7: #{tpu_custom_call.1} parent=1 // loop_footer_branch
      %41 = sbr.rel target = $region3
    $region8: #{tpu_custom_call.1} parent=1 // loop_exit
      _
    %2620 = vsyncpa [#allocation7], 1
    %s2621 = scalar_lea.sflag [#allocation7], 1
    %2622 = vsyncpa %s2621, 1
    %2623 = vsyncpa [#allocation10], 1
    %s2624 = scalar_lea.sflag [#allocation10], 1
    %2625 = vsyncpa %s2624, 1
    %2626 = vsyncpa [#allocation13], 1
    %s2627 = scalar_lea.sflag [#allocation13], 1
    %2628 = vsyncpa %s2627, 1
    %2629 = vsyncpa [#allocation16], 1
    %s2630 = scalar_lea.sflag [#allocation16], 1
    %2631 = vsyncpa %s2630, 1
    %2632 = vsyncpa [#allocation19], 1
    %s2633 = scalar_lea.sflag [#allocation19], 1
    %2634 = vsyncpa %s2633, 1
    %2635 = vsyncpa [#allocation8], 1
    %s2636 = scalar_lea.sflag [#allocation8], 1
    %2637 = vsyncpa %s2636, 1
    %2638 = vsyncpa [#allocation22], 1

</llo_original>
